<compile_context>
chip_gen: v7x
topology: tpu7x:2x2x1
jax: 0.10.0
libtpu: 0.0.40
codegen_flags: <defaults>
</compile_context>

<pallas_src>
import functools

import jax
import jax.numpy as jnp
from jax import lax
from jax.experimental import pallas as pl
from jax.experimental.pallas import tpu as pltpu

# tag_to_ix = {'B':0,'E':1,'I':2,'S':3, '<END_TAG>':4, '<START_TAG>':5}
END_TAG = 4
START_TAG = 5
TAGSET = 6
NEG = -10000.0  # python float only (never a jax.Array -> nothing gets closure-captured)


def _make_kernel(seq, hidden_dim):
    Hh = hidden_dim // 2
    T = TAGSET

    def kernel(emb_ref, wih_ref, whh_ref, b_ref, wt_ref, bt_ref,
               trans_ref, trans_t_ref, trans_end_ref, h0_ref, c0_ref,
               score_ref, path_ref):
        # ---- hoisted input projection: both directions & both time orders in ONE matmul ----
        # emb_ref row t = [emb_t | emb_{seq-1-t}]; wih_ref is block-padded so forward gate lanes
        # see emb_t @ W_ih_f and backward gate lanes see emb_{seq-1-t} @ W_ih_b.
        xw = (jnp.dot(emb_ref[...], wih_ref[...],
                      preferred_element_type=jnp.float32) + b_ref[...])        # (seq, 8Hh) f32

        lane8H = lax.broadcasted_iota(jnp.int32, (1, 8 * Hh), 1)
        is_g_lane = (lane8H >= 4 * Hh) & (lane8H < 6 * Hh)        # cell-gate (tanh) lanes
        sub_seq = lax.broadcasted_iota(jnp.int32, (seq, 1), 0)

        h = h0_ref[...]                                           # (1, 2Hh)  [fwd | bwd]
        c = c0_ref[...]
        out_f = jnp.zeros((seq, Hh), jnp.float32)
        out_b = jnp.zeros((seq, Hh), jnp.float32)

        # ---- fused fwd/bwd recurrence: one bf16 MXU push + two EUP pushes per step ----
        # TODO(synk): statically unrolled (seq is small); move to lax.fori_loop + VMEM scratch
        # (and seq-tiled BlockSpecs for v7x's 64 MiB VMEM) if seq >> 32.
        for t in range(seq):
            g_h = jnp.dot(h.astype(jnp.bfloat16), whh_ref[...],
                          preferred_element_type=jnp.float32)                  # (1, 8Hh)
            gates = g_h + xw[t:t + 1, :]
            # single tanh push covers both sigmoid lanes (0.5*tanh(x/2)+0.5) and tanh lanes
            th = jnp.tanh(jnp.where(is_g_lane, gates, gates * 0.5))
            act = jnp.where(is_g_lane, th, 0.5 * th + 0.5)
            i_g = act[:, 0:2 * Hh]
            f_g = act[:, 2 * Hh:4 * Hh]
            g_g = act[:, 4 * Hh:6 * Hh]
            o_g = act[:, 6 * Hh:8 * Hh]
            c = f_g * c + i_g * g_g
            h = o_g * jnp.tanh(c)
            # accumulate LSTM outputs as values (no masked narrow VMEM stores); these selects
            # don't feed the h->h chain, so they overlap with the next step's matmul.
            out_f = jnp.where(sub_seq == t, h[:, 0:Hh], out_f)
            out_b = jnp.where(sub_seq == seq - 1 - t, h[:, Hh:2 * Hh], out_b)

        # ---- hidden2tag: two tiny bf16 matmuls (avoids any sublane concatenate) ----
        feats = (jnp.dot(out_f.astype(jnp.bfloat16), wt_ref[0:Hh, :],
                         preferred_element_type=jnp.float32)
                 + jnp.dot(out_b.astype(jnp.bfloat16), wt_ref[Hh:2 * Hh, :],
                           preferred_element_type=jnp.float32)
                 + bt_ref[...])                                                 # (seq, T) f32

        # ---- Viterbi decode (alternating orientation: no per-step fv transpose) ----
        trans = trans_ref[...]        # (T, T)  trans[next, prev]
        trans_t = trans_t_ref[...]    # (T, T)  trans_t[prev, next]
        lane_T = lax.broadcasted_iota(jnp.int32, (1, T), 1)
        sub_T = lax.broadcasted_iota(jnp.int32, (T, 1), 0)
        row_TT = lax.broadcasted_iota(jnp.int32, (T, T), 0)
        col_TT = lax.broadcasted_iota(jnp.int32, (T, T), 1)
        eye = row_TT == col_TT

        # feat rows needed in column orientation (odd steps) are converted up front,
        # off the serial Viterbi recursion.
        feat_col = {t: jnp.sum(jnp.where(eye, feats[t:t + 1, :], 0.0),
                               axis=1, keepdims=True)
                    for t in range(1, seq, 2)}                                  # (T, 1)

        fv = jnp.where(sub_T == START_TAG, 0.0, NEG)      # (T, 1) column, indexed by prev
        bps = [None] * seq
        for t in range(seq):
            if t % 2 == 0:            # column state in -> row state out
                m = fv + trans_t                                       # m[prev, next]
                vv = jnp.max(m, axis=0, keepdims=True)                 # (1, T)
                bps[t] = jnp.min(jnp.where(m == vv, row_TT, T),
                                 axis=0, keepdims=True)                # (1, T) int32
                fv = vv + feats[t:t + 1, :]
            else:                     # row state in -> column state out
                m = fv + trans                                         # m[next, prev]
                vv = jnp.max(m, axis=1, keepdims=True)                 # (T, 1)
                bps[t] = jnp.min(jnp.where(m == vv, col_TT, T),
                                 axis=1, keepdims=True)                # (T, 1) int32
                fv = vv + feat_col[t]

        if (seq - 1) % 2 == 0:        # final forward_vars is a row
            terminal = fv + trans_end_ref[...]                         # (1, T)
            mxt = jnp.max(terminal, axis=1, keepdims=True)
            best_tag = jnp.min(jnp.where(terminal == mxt, lane_T, T),
                               axis=1, keepdims=True)
        else:                         # final forward_vars is a column
            terminal = fv + trans_end_ref[...]                         # (T, 1)
            mxt = jnp.max(terminal, axis=0, keepdims=True)
            best_tag = jnp.min(jnp.where(terminal == mxt, sub_T, T),
                               axis=0, keepdims=True)
        score_ref[...] = mxt

        # ---- backtrace: whole path assembled in one vector, single store ----
        lane_seq = lax.broadcasted_iota(jnp.int32, (1, seq), 1)
        tag = best_tag                                                 # (1, 1) int32
        path_vec = jnp.where(lane_seq == seq - 1, tag, 0)
        for t in range(seq - 1, 0, -1):
            bp = bps[t]
            if t % 2 == 0:            # bp is a row indexed by `next` on lanes
                tag = jnp.sum(jnp.where(lane_T == tag, bp, 0), axis=1, keepdims=True)
            else:                     # bp is a column indexed by `next` on sublanes
                tag = jnp.sum(jnp.where(sub_T == tag, bp, 0), axis=0, keepdims=True)
            path_vec = jnp.where(lane_seq == t - 1, tag, path_vec)
        path_ref[...] = path_vec
        # TODO(synk): the PyTorch code asserts the backtraced start tag == START_TAG; skipped.

    return kernel


def bilstm_crf_forward(sequence, params):
    emb_table = params["embedding"]
    seq = int(sequence.shape[0])
    D = int(emb_table.shape[1])
    hidden_dim = int(params["wt"].shape[0])
    Hh = hidden_dim // 2
    T = TAGSET

    # --- glue in plain JAX (runs once per call under jit): gather + weight repacking ---
    embeds = emb_table[sequence]                                         # (seq, D) f32
    emb_comb = jnp.concatenate([embeds, embeds[::-1, :]],
                               axis=1).astype(jnp.bfloat16)              # (seq, 2D)

    # interleaved gate layout: [i_f,i_b | f_f,f_b | g_f,g_b | o_f,o_b], each block Hh wide
    wih_cat = jnp.zeros((2 * D, 8 * Hh), jnp.float32)
    whh_blk = jnp.zeros((2 * Hh, 8 * Hh), jnp.float32)
    b_cat = jnp.zeros((1, 8 * Hh), jnp.float32)
    for k in range(4):
        fs, bs = 2 * k * Hh, (2 * k + 1) * Hh
        gf = slice(k * Hh, (k + 1) * Hh)
        wih_cat = wih_cat.at[0:D, fs:fs + Hh].set(params["wih_f"][:, gf])
        wih_cat = wih_cat.at[D:2 * D, bs:bs + Hh].set(params["wih_b"][:, gf])
        whh_blk = whh_blk.at[0:Hh, fs:fs + Hh].set(params["whh_f"][:, gf])
        whh_blk = whh_blk.at[Hh:2 * Hh, bs:bs + Hh].set(params["whh_b"][:, gf])
        b_cat = b_cat.at[:, fs:fs + Hh].set(params["b_f"][:, gf])
        b_cat = b_cat.at[:, bs:bs + Hh].set(params["b_b"][:, gf])
    wih_cat = wih_cat.astype(jnp.bfloat16)
    whh_blk = whh_blk.astype(jnp.bfloat16)

    wt_bf = params["wt"].astype(jnp.bfloat16)                            # (2Hh, T)
    trans = params["trans"]                                              # (T, T) [next, prev]
    trans_t = trans.T                                                    # (T, T) [prev, next]
    if seq % 2 == 0:   # final Viterbi state is a column -> END transitions as a column
        trans_end = trans[END_TAG, :].reshape(T, 1)
    else:
        trans_end = trans[END_TAG:END_TAG + 1, :]
    h0_cat = params["h0"].reshape(1, hidden_dim)                         # (1, 2Hh) [fwd | bwd]
    c0_cat = params["c0"].reshape(1, hidden_dim)

    kernel = _make_kernel(seq, hidden_dim)
    vspec = pl.BlockSpec(memory_space=pltpu.MemorySpace.VMEM)

    score, path = pl.pallas_call(
        kernel,
        out_shape=(jax.ShapeDtypeStruct((1, 1), jnp.float32),
                   jax.ShapeDtypeStruct((1, seq), jnp.int32)),
        in_specs=[vspec] * 11,
        out_specs=(vspec, vspec),
    )(emb_comb, wih_cat, whh_blk, b_cat, wt_bf, params["bt"],
      trans, trans_t, trans_end, h0_cat, c0_cat)
    return score[0, 0], path[0]


def init_params(key, vocab_size, input_dim, hidden_dim):
    Hh = hidden_dim // 2
    ks = jax.random.split(key, 12)
    scale = 1.0 / (Hh ** 0.5)
    uni = functools.partial(jax.random.uniform, minval=-scale, maxval=scale,
                            dtype=jnp.float32)
    trans = jax.random.normal(ks[9], (TAGSET, TAGSET), jnp.float32)
    trans = trans.at[START_TAG, :].set(-10000.0)
    trans = trans.at[:, END_TAG].set(-10000.0)
    return {
        "embedding": jax.random.normal(ks[0], (vocab_size, input_dim), jnp.float32),
        "wih_f": uni(ks[1], (input_dim, 4 * Hh)),
        "whh_f": uni(ks[2], (Hh, 4 * Hh)),
        "b_f":   uni(ks[3], (1, 4 * Hh)),        # b_ih + b_hh combined
        "wih_b": uni(ks[4], (input_dim, 4 * Hh)),
        "whh_b": uni(ks[5], (Hh, 4 * Hh)),
        "b_b":   uni(ks[6], (1, 4 * Hh)),
        "wt":    uni(ks[7], (hidden_dim, TAGSET)),
        "bt":    uni(ks[8], (1, TAGSET)),
        "trans": trans,
        # init_hidden(): random initial (h0, c0), one row per direction
        "h0": jax.random.normal(ks[10], (2, Hh), jnp.float32),
        "c0": jax.random.normal(ks[11], (2, Hh), jnp.float32),
    }


if __name__ == "__main__":
    input_dim, hidden_dim, seq_len = 16, 32, 8
    vocab_size = 4179   # module default when word_to_ix is None

    key = jax.random.PRNGKey(0)
    k_params, k_seq = jax.random.split(key)
    params = init_params(k_params, vocab_size, input_dim, hidden_dim)
    sequence = jax.random.randint(k_seq, (seq_len,), 0, vocab_size, dtype=jnp.int32)

    score, best_path = jax.jit(bilstm_crf_forward)(sequence, params)
    jax.block_until_ready((score, best_path))
    print("KERNEL_OK")
</pallas_src>

<mosaic_0001>
module attributes {stable_mosaic.version = 11 : i64} {
  func.func @kernel(%arg0: memref<8x32xbf16, #tpu.memory_space<vmem>>, %arg1: memref<32x128xbf16, #tpu.memory_space<vmem>>, %arg2: memref<32x128xbf16, #tpu.memory_space<vmem>>, %arg3: memref<1x128xf32, #tpu.memory_space<vmem>>, %arg4: memref<32x6xbf16, #tpu.memory_space<vmem>>, %arg5: memref<1x6xf32, #tpu.memory_space<vmem>>, %arg6: memref<6x6xf32, #tpu.memory_space<vmem>>, %arg7: memref<6x6xf32, #tpu.memory_space<vmem>>, %arg8: memref<6x1xf32, #tpu.memory_space<vmem>>, %arg9: memref<1x32xf32, #tpu.memory_space<vmem>>, %arg10: memref<1x32xf32, #tpu.memory_space<vmem>>, %arg11: memref<1x1xf32, #tpu.memory_space<vmem>>, %arg12: memref<1x8xi32, #tpu.memory_space<vmem>>) attributes {dimension_semantics = [], scalar_prefetch = 0 : i64, scratch_operands = 0 : i64, tpu.core_type = #tpu.core_type<tc>} {
    %c0 = arith.constant 0 : index
    %c0_0 = arith.constant 0 : index
    %0 = vector.load %arg0[%c0, %c0_0] : memref<8x32xbf16, #tpu.memory_space<vmem>>, vector<8x32xbf16>
    %c0_1 = arith.constant 0 : index
    %c0_2 = arith.constant 0 : index
    %1 = vector.load %arg1[%c0_1, %c0_2] : memref<32x128xbf16, #tpu.memory_space<vmem>>, vector<32x128xbf16>
    %cst = arith.constant dense<0.000000e+00> : vector<8x128xf32>
    %2 = tpu.matmul %0, %1, %cst {dimension_numbers = #tpu.dot_dimension_numbers<[1], [0], [0], [1], [0, 0, 1, 1], [], []>} : vector<8x32xbf16>, vector<32x128xbf16>, vector<8x128xf32> -> vector<8x128xf32>
    %c0_3 = arith.constant 0 : index
    %c0_4 = arith.constant 0 : index
    %3 = vector.load %arg3[%c0_3, %c0_4] : memref<1x128xf32, #tpu.memory_space<vmem>>, vector<1x128xf32>
    %4 = vector.broadcast %3 : vector<1x128xf32> to vector<8x128xf32>
    %5 = arith.addf %2, %4 : vector<8x128xf32>
    %6 = tpu.iota {dimensions = array<i32: 1>} : vector<1x128xi32>
    %c64_i32 = arith.constant 64 : i32
    %7 = vector.broadcast %c64_i32 : i32 to vector<1x128xi32>
    %8 = arith.cmpi sge, %6, %7 : vector<1x128xi32>
    %c96_i32 = arith.constant 96 : i32
    %9 = vector.broadcast %c96_i32 : i32 to vector<1x128xi32>
    %10 = arith.cmpi slt, %6, %9 : vector<1x128xi32>
    %11 = arith.andi %8, %10 : vector<1x128xi1>
    %12 = tpu.iota {dimensions = array<i32: 0>} : vector<8x1xi32>
    %c0_5 = arith.constant 0 : index
    %c0_6 = arith.constant 0 : index
    %13 = vector.load %arg9[%c0_5, %c0_6] : memref<1x32xf32, #tpu.memory_space<vmem>>, vector<1x32xf32>
    %c0_7 = arith.constant 0 : index
    %c0_8 = arith.constant 0 : index
    %14 = vector.load %arg10[%c0_7, %c0_8] : memref<1x32xf32, #tpu.memory_space<vmem>>, vector<1x32xf32>
    %cst_9 = arith.constant 0.000000e+00 : f32
    %15 = vector.broadcast %cst_9 : f32 to vector<8x16xf32>
    %cst_10 = arith.constant 0.000000e+00 : f32
    %16 = vector.broadcast %cst_10 : f32 to vector<8x16xf32>
    %17 = arith.truncf %13 : vector<1x32xf32> to vector<1x32xbf16>
    %c0_11 = arith.constant 0 : index
    %c0_12 = arith.constant 0 : index
    %18 = vector.load %arg2[%c0_11, %c0_12] : memref<32x128xbf16, #tpu.memory_space<vmem>>, vector<32x128xbf16>
    %cst_13 = arith.constant dense<0.000000e+00> : vector<1x128xf32>
    %19 = tpu.matmul %17, %18, %cst_13 {dimension_numbers = #tpu.dot_dimension_numbers<[1], [0], [0], [1], [0, 0, 1, 1], [], []>} : vector<1x32xbf16>, vector<32x128xbf16>, vector<1x128xf32> -> vector<1x128xf32>
    %20 = vector.extract_strided_slice %5 {offsets = [0, 0], sizes = [1, 128], strides = [1, 1]} : vector<8x128xf32> to vector<1x128xf32>
    %21 = arith.addf %19, %20 : vector<1x128xf32>
    %cst_14 = arith.constant 5.000000e-01 : f32
    %22 = vector.broadcast %cst_14 : f32 to vector<1x128xf32>
    %23 = arith.mulf %21, %22 : vector<1x128xf32>
    %24 = arith.select %11, %21, %23 : vector<1x128xi1>, vector<1x128xf32>
    %25 = math.tanh %24 : vector<1x128xf32>
    %cst_15 = arith.constant 5.000000e-01 : f32
    %26 = vector.broadcast %cst_15 : f32 to vector<1x128xf32>
    %27 = arith.mulf %26, %25 : vector<1x128xf32>
    %cst_16 = arith.constant 5.000000e-01 : f32
    %28 = vector.broadcast %cst_16 : f32 to vector<1x128xf32>
    %29 = arith.addf %27, %28 : vector<1x128xf32>
    %30 = arith.select %11, %25, %29 : vector<1x128xi1>, vector<1x128xf32>
    %31 = vector.extract_strided_slice %30 {offsets = [0, 0], sizes = [1, 32], strides = [1, 1]} : vector<1x128xf32> to vector<1x32xf32>
    %32 = vector.extract_strided_slice %30 {offsets = [0, 32], sizes = [1, 32], strides = [1, 1]} : vector<1x128xf32> to vector<1x32xf32>
    %33 = vector.extract_strided_slice %30 {offsets = [0, 64], sizes = [1, 32], strides = [1, 1]} : vector<1x128xf32> to vector<1x32xf32>
    %34 = vector.extract_strided_slice %30 {offsets = [0, 96], sizes = [1, 32], strides = [1, 1]} : vector<1x128xf32> to vector<1x32xf32>
    %35 = arith.mulf %32, %14 : vector<1x32xf32>
    %36 = arith.mulf %31, %33 : vector<1x32xf32>
    %37 = arith.addf %35, %36 : vector<1x32xf32>
    %38 = math.tanh %37 : vector<1x32xf32>
    %39 = arith.mulf %34, %38 : vector<1x32xf32>
    %c0_i32 = arith.constant 0 : i32
    %40 = vector.broadcast %c0_i32 : i32 to vector<8x1xi32>
    %41 = arith.cmpi eq, %12, %40 : vector<8x1xi32>
    %42 = vector.extract_strided_slice %39 {offsets = [0, 0], sizes = [1, 16], strides = [1, 1]} : vector<1x32xf32> to vector<1x16xf32>
    %43 = vector.shape_cast %41 : vector<8x1xi1> to vector<8x1xi1>
    %44 = vector.broadcast %43 : vector<8x1xi1> to vector<8x16xi1>
    %45 = vector.shape_cast %42 : vector<1x16xf32> to vector<1x16xf32>
    %46 = vector.broadcast %45 : vector<1x16xf32> to vector<8x16xf32>
    %47 = arith.select %44, %46, %15 : vector<8x16xi1>, vector<8x16xf32>
    %c7_i32 = arith.constant 7 : i32
    %48 = vector.broadcast %c7_i32 : i32 to vector<8x1xi32>
    %49 = arith.cmpi eq, %12, %48 : vector<8x1xi32>
    %50 = vector.extract_strided_slice %39 {offsets = [0, 16], sizes = [1, 16], strides = [1, 1]} : vector<1x32xf32> to vector<1x16xf32>
    %51 = vector.shape_cast %49 : vector<8x1xi1> to vector<8x1xi1>
    %52 = vector.broadcast %51 : vector<8x1xi1> to vector<8x16xi1>
    %53 = vector.shape_cast %50 : vector<1x16xf32> to vector<1x16xf32>
    %54 = vector.broadcast %53 : vector<1x16xf32> to vector<8x16xf32>
    %55 = arith.select %52, %54, %16 : vector<8x16xi1>, vector<8x16xf32>
    %56 = arith.truncf %39 : vector<1x32xf32> to vector<1x32xbf16>
    %c0_17 = arith.constant 0 : index
    %c0_18 = arith.constant 0 : index
    %57 = vector.load %arg2[%c0_17, %c0_18] : memref<32x128xbf16, #tpu.memory_space<vmem>>, vector<32x128xbf16>
    %cst_19 = arith.constant dense<0.000000e+00> : vector<1x128xf32>
    %58 = tpu.matmul %56, %57, %cst_19 {dimension_numbers = #tpu.dot_dimension_numbers<[1], [0], [0], [1], [0, 0, 1, 1], [], []>} : vector<1x32xbf16>, vector<32x128xbf16>, vector<1x128xf32> -> vector<1x128xf32>
    %59 = vector.extract_strided_slice %5 {offsets = [1, 0], sizes = [1, 128], strides = [1, 1]} : vector<8x128xf32> to vector<1x128xf32>
    %60 = arith.addf %58, %59 : vector<1x128xf32>
    %cst_20 = arith.constant 5.000000e-01 : f32
    %61 = vector.broadcast %cst_20 : f32 to vector<1x128xf32>
    %62 = arith.mulf %60, %61 : vector<1x128xf32>
    %63 = arith.select %11, %60, %62 : vector<1x128xi1>, vector<1x128xf32>
    %64 = math.tanh %63 : vector<1x128xf32>
    %cst_21 = arith.constant 5.000000e-01 : f32
    %65 = vector.broadcast %cst_21 : f32 to vector<1x128xf32>
    %66 = arith.mulf %65, %64 : vector<1x128xf32>
    %cst_22 = arith.constant 5.000000e-01 : f32
    %67 = vector.broadcast %cst_22 : f32 to vector<1x128xf32>
    %68 = arith.addf %66, %67 : vector<1x128xf32>
    %69 = arith.select %11, %64, %68 : vector<1x128xi1>, vector<1x128xf32>
    %70 = vector.extract_strided_slice %69 {offsets = [0, 0], sizes = [1, 32], strides = [1, 1]} : vector<1x128xf32> to vector<1x32xf32>
    %71 = vector.extract_strided_slice %69 {offsets = [0, 32], sizes = [1, 32], strides = [1, 1]} : vector<1x128xf32> to vector<1x32xf32>
    %72 = vector.extract_strided_slice %69 {offsets = [0, 64], sizes = [1, 32], strides = [1, 1]} : vector<1x128xf32> to vector<1x32xf32>
    %73 = vector.extract_strided_slice %69 {offsets = [0, 96], sizes = [1, 32], strides = [1, 1]} : vector<1x128xf32> to vector<1x32xf32>
    %74 = arith.mulf %71, %37 : vector<1x32xf32>
    %75 = arith.mulf %70, %72 : vector<1x32xf32>
    %76 = arith.addf %74, %75 : vector<1x32xf32>
    %77 = math.tanh %76 : vector<1x32xf32>
    %78 = arith.mulf %73, %77 : vector<1x32xf32>
    %c1_i32 = arith.constant 1 : i32
    %79 = vector.broadcast %c1_i32 : i32 to vector<8x1xi32>
    %80 = arith.cmpi eq, %12, %79 : vector<8x1xi32>
    %81 = vector.extract_strided_slice %78 {offsets = [0, 0], sizes = [1, 16], strides = [1, 1]} : vector<1x32xf32> to vector<1x16xf32>
    %82 = vector.shape_cast %80 : vector<8x1xi1> to vector<8x1xi1>
    %83 = vector.broadcast %82 : vector<8x1xi1> to vector<8x16xi1>
    %84 = vector.shape_cast %81 : vector<1x16xf32> to vector<1x16xf32>
    %85 = vector.broadcast %84 : vector<1x16xf32> to vector<8x16xf32>
    %86 = arith.select %83, %85, %47 : vector<8x16xi1>, vector<8x16xf32>
    %c6_i32 = arith.constant 6 : i32
    %87 = vector.broadcast %c6_i32 : i32 to vector<8x1xi32>
    %88 = arith.cmpi eq, %12, %87 : vector<8x1xi32>
    %89 = vector.extract_strided_slice %78 {offsets = [0, 16], sizes = [1, 16], strides = [1, 1]} : vector<1x32xf32> to vector<1x16xf32>
    %90 = vector.shape_cast %88 : vector<8x1xi1> to vector<8x1xi1>
    %91 = vector.broadcast %90 : vector<8x1xi1> to vector<8x16xi1>
    %92 = vector.shape_cast %89 : vector<1x16xf32> to vector<1x16xf32>
    %93 = vector.broadcast %92 : vector<1x16xf32> to vector<8x16xf32>
    %94 = arith.select %91, %93, %55 : vector<8x16xi1>, vector<8x16xf32>
    %95 = arith.truncf %78 : vector<1x32xf32> to vector<1x32xbf16>
    %c0_23 = arith.constant 0 : index
    %c0_24 = arith.constant 0 : index
    %96 = vector.load %arg2[%c0_23, %c0_24] : memref<32x128xbf16, #tpu.memory_space<vmem>>, vector<32x128xbf16>
    %cst_25 = arith.constant dense<0.000000e+00> : vector<1x128xf32>
    %97 = tpu.matmul %95, %96, %cst_25 {dimension_numbers = #tpu.dot_dimension_numbers<[1], [0], [0], [1], [0, 0, 1, 1], [], []>} : vector<1x32xbf16>, vector<32x128xbf16>, vector<1x128xf32> -> vector<1x128xf32>
    %98 = vector.extract_strided_slice %5 {offsets = [2, 0], sizes = [1, 128], strides = [1, 1]} : vector<8x128xf32> to vector<1x128xf32>
    %99 = arith.addf %97, %98 : vector<1x128xf32>
    %cst_26 = arith.constant 5.000000e-01 : f32
    %100 = vector.broadcast %cst_26 : f32 to vector<1x128xf32>
    %101 = arith.mulf %99, %100 : vector<1x128xf32>
    %102 = arith.select %11, %99, %101 : vector<1x128xi1>, vector<1x128xf32>
    %103 = math.tanh %102 : vector<1x128xf32>
    %cst_27 = arith.constant 5.000000e-01 : f32
    %104 = vector.broadcast %cst_27 : f32 to vector<1x128xf32>
    %105 = arith.mulf %104, %103 : vector<1x128xf32>
    %cst_28 = arith.constant 5.000000e-01 : f32
    %106 = vector.broadcast %cst_28 : f32 to vector<1x128xf32>
    %107 = arith.addf %105, %106 : vector<1x128xf32>
    %108 = arith.select %11, %103, %107 : vector<1x128xi1>, vector<1x128xf32>
    %109 = vector.extract_strided_slice %108 {offsets = [0, 0], sizes = [1, 32], strides = [1, 1]} : vector<1x128xf32> to vector<1x32xf32>
    %110 = vector.extract_strided_slice %108 {offsets = [0, 32], sizes = [1, 32], strides = [1, 1]} : vector<1x128xf32> to vector<1x32xf32>
    %111 = vector.extract_strided_slice %108 {offsets = [0, 64], sizes = [1, 32], strides = [1, 1]} : vector<1x128xf32> to vector<1x32xf32>
    %112 = vector.extract_strided_slice %108 {offsets = [0, 96], sizes = [1, 32], strides = [1, 1]} : vector<1x128xf32> to vector<1x32xf32>
    %113 = arith.mulf %110, %76 : vector<1x32xf32>
    %114 = arith.mulf %109, %111 : vector<1x32xf32>
    %115 = arith.addf %113, %114 : vector<1x32xf32>
    %116 = math.tanh %115 : vector<1x32xf32>
    %117 = arith.mulf %112, %116 : vector<1x32xf32>
    %c2_i32 = arith.constant 2 : i32
    %118 = vector.broadcast %c2_i32 : i32 to vector<8x1xi32>
    %119 = arith.cmpi eq, %12, %118 : vector<8x1xi32>
    %120 = vector.extract_strided_slice %117 {offsets = [0, 0], sizes = [1, 16], strides = [1, 1]} : vector<1x32xf32> to vector<1x16xf32>
    %121 = vector.shape_cast %119 : vector<8x1xi1> to vector<8x1xi1>
    %122 = vector.broadcast %121 : vector<8x1xi1> to vector<8x16xi1>
    %123 = vector.shape_cast %120 : vector<1x16xf32> to vector<1x16xf32>
    %124 = vector.broadcast %123 : vector<1x16xf32> to vector<8x16xf32>
    %125 = arith.select %122, %124, %86 : vector<8x16xi1>, vector<8x16xf32>
    %c5_i32 = arith.constant 5 : i32
    %126 = vector.broadcast %c5_i32 : i32 to vector<8x1xi32>
    %127 = arith.cmpi eq, %12, %126 : vector<8x1xi32>
    %128 = vector.extract_strided_slice %117 {offsets = [0, 16], sizes = [1, 16], strides = [1, 1]} : vector<1x32xf32> to vector<1x16xf32>
    %129 = vector.shape_cast %127 : vector<8x1xi1> to vector<8x1xi1>
    %130 = vector.broadcast %129 : vector<8x1xi1> to vector<8x16xi1>
    %131 = vector.shape_cast %128 : vector<1x16xf32> to vector<1x16xf32>
    %132 = vector.broadcast %131 : vector<1x16xf32> to vector<8x16xf32>
    %133 = arith.select %130, %132, %94 : vector<8x16xi1>, vector<8x16xf32>
    %134 = arith.truncf %117 : vector<1x32xf32> to vector<1x32xbf16>
    %c0_29 = arith.constant 0 : index
    %c0_30 = arith.constant 0 : index
    %135 = vector.load %arg2[%c0_29, %c0_30] : memref<32x128xbf16, #tpu.memory_space<vmem>>, vector<32x128xbf16>
    %cst_31 = arith.constant dense<0.000000e+00> : vector<1x128xf32>
    %136 = tpu.matmul %134, %135, %cst_31 {dimension_numbers = #tpu.dot_dimension_numbers<[1], [0], [0], [1], [0, 0, 1, 1], [], []>} : vector<1x32xbf16>, vector<32x128xbf16>, vector<1x128xf32> -> vector<1x128xf32>
    %137 = vector.extract_strided_slice %5 {offsets = [3, 0], sizes = [1, 128], strides = [1, 1]} : vector<8x128xf32> to vector<1x128xf32>
    %138 = arith.addf %136, %137 : vector<1x128xf32>
    %cst_32 = arith.constant 5.000000e-01 : f32
    %139 = vector.broadcast %cst_32 : f32 to vector<1x128xf32>
    %140 = arith.mulf %138, %139 : vector<1x128xf32>
    %141 = arith.select %11, %138, %140 : vector<1x128xi1>, vector<1x128xf32>
    %142 = math.tanh %141 : vector<1x128xf32>
    %cst_33 = arith.constant 5.000000e-01 : f32
    %143 = vector.broadcast %cst_33 : f32 to vector<1x128xf32>
    %144 = arith.mulf %143, %142 : vector<1x128xf32>
    %cst_34 = arith.constant 5.000000e-01 : f32
    %145 = vector.broadcast %cst_34 : f32 to vector<1x128xf32>
    %146 = arith.addf %144, %145 : vector<1x128xf32>
    %147 = arith.select %11, %142, %146 : vector<1x128xi1>, vector<1x128xf32>
    %148 = vector.extract_strided_slice %147 {offsets = [0, 0], sizes = [1, 32], strides = [1, 1]} : vector<1x128xf32> to vector<1x32xf32>
    %149 = vector.extract_strided_slice %147 {offsets = [0, 32], sizes = [1, 32], strides = [1, 1]} : vector<1x128xf32> to vector<1x32xf32>
    %150 = vector.extract_strided_slice %147 {offsets = [0, 64], sizes = [1, 32], strides = [1, 1]} : vector<1x128xf32> to vector<1x32xf32>
    %151 = vector.extract_strided_slice %147 {offsets = [0, 96], sizes = [1, 32], strides = [1, 1]} : vector<1x128xf32> to vector<1x32xf32>
    %152 = arith.mulf %149, %115 : vector<1x32xf32>
    %153 = arith.mulf %148, %150 : vector<1x32xf32>
    %154 = arith.addf %152, %153 : vector<1x32xf32>
    %155 = math.tanh %154 : vector<1x32xf32>
    %156 = arith.mulf %151, %155 : vector<1x32xf32>
    %c3_i32 = arith.constant 3 : i32
    %157 = vector.broadcast %c3_i32 : i32 to vector<8x1xi32>
    %158 = arith.cmpi eq, %12, %157 : vector<8x1xi32>
    %159 = vector.extract_strided_slice %156 {offsets = [0, 0], sizes = [1, 16], strides = [1, 1]} : vector<1x32xf32> to vector<1x16xf32>
    %160 = vector.shape_cast %158 : vector<8x1xi1> to vector<8x1xi1>
    %161 = vector.broadcast %160 : vector<8x1xi1> to vector<8x16xi1>
    %162 = vector.shape_cast %159 : vector<1x16xf32> to vector<1x16xf32>
    %163 = vector.broadcast %162 : vector<1x16xf32> to vector<8x16xf32>
    %164 = arith.select %161, %163, %125 : vector<8x16xi1>, vector<8x16xf32>
    %c4_i32 = arith.constant 4 : i32
    %165 = vector.broadcast %c4_i32 : i32 to vector<8x1xi32>
    %166 = arith.cmpi eq, %12, %165 : vector<8x1xi32>
    %167 = vector.extract_strided_slice %156 {offsets = [0, 16], sizes = [1, 16], strides = [1, 1]} : vector<1x32xf32> to vector<1x16xf32>
    %168 = vector.shape_cast %166 : vector<8x1xi1> to vector<8x1xi1>
    %169 = vector.broadcast %168 : vector<8x1xi1> to vector<8x16xi1>
    %170 = vector.shape_cast %167 : vector<1x16xf32> to vector<1x16xf32>
    %171 = vector.broadcast %170 : vector<1x16xf32> to vector<8x16xf32>
    %172 = arith.select %169, %171, %133 : vector<8x16xi1>, vector<8x16xf32>
    %173 = arith.truncf %156 : vector<1x32xf32> to vector<1x32xbf16>
    %c0_35 = arith.constant 0 : index
    %c0_36 = arith.constant 0 : index
    %174 = vector.load %arg2[%c0_35, %c0_36] : memref<32x128xbf16, #tpu.memory_space<vmem>>, vector<32x128xbf16>
    %cst_37 = arith.constant dense<0.000000e+00> : vector<1x128xf32>
    %175 = tpu.matmul %173, %174, %cst_37 {dimension_numbers = #tpu.dot_dimension_numbers<[1], [0], [0], [1], [0, 0, 1, 1], [], []>} : vector<1x32xbf16>, vector<32x128xbf16>, vector<1x128xf32> -> vector<1x128xf32>
    %176 = vector.extract_strided_slice %5 {offsets = [4, 0], sizes = [1, 128], strides = [1, 1]} : vector<8x128xf32> to vector<1x128xf32>
    %177 = arith.addf %175, %176 : vector<1x128xf32>
    %cst_38 = arith.constant 5.000000e-01 : f32
    %178 = vector.broadcast %cst_38 : f32 to vector<1x128xf32>
    %179 = arith.mulf %177, %178 : vector<1x128xf32>
    %180 = arith.select %11, %177, %179 : vector<1x128xi1>, vector<1x128xf32>
    %181 = math.tanh %180 : vector<1x128xf32>
    %cst_39 = arith.constant 5.000000e-01 : f32
    %182 = vector.broadcast %cst_39 : f32 to vector<1x128xf32>
    %183 = arith.mulf %182, %181 : vector<1x128xf32>
    %cst_40 = arith.constant 5.000000e-01 : f32
    %184 = vector.broadcast %cst_40 : f32 to vector<1x128xf32>
    %185 = arith.addf %183, %184 : vector<1x128xf32>
    %186 = arith.select %11, %181, %185 : vector<1x128xi1>, vector<1x128xf32>
    %187 = vector.extract_strided_slice %186 {offsets = [0, 0], sizes = [1, 32], strides = [1, 1]} : vector<1x128xf32> to vector<1x32xf32>
    %188 = vector.extract_strided_slice %186 {offsets = [0, 32], sizes = [1, 32], strides = [1, 1]} : vector<1x128xf32> to vector<1x32xf32>
    %189 = vector.extract_strided_slice %186 {offsets = [0, 64], sizes = [1, 32], strides = [1, 1]} : vector<1x128xf32> to vector<1x32xf32>
    %190 = vector.extract_strided_slice %186 {offsets = [0, 96], sizes = [1, 32], strides = [1, 1]} : vector<1x128xf32> to vector<1x32xf32>
    %191 = arith.mulf %188, %154 : vector<1x32xf32>
    %192 = arith.mulf %187, %189 : vector<1x32xf32>
    %193 = arith.addf %191, %192 : vector<1x32xf32>
    %194 = math.tanh %193 : vector<1x32xf32>
    %195 = arith.mulf %190, %194 : vector<1x32xf32>
    %c4_i32_41 = arith.constant 4 : i32
    %196 = vector.broadcast %c4_i32_41 : i32 to vector<8x1xi32>
    %197 = arith.cmpi eq, %12, %196 : vector<8x1xi32>
    %198 = vector.extract_strided_slice %195 {offsets = [0, 0], sizes = [1, 16], strides = [1, 1]} : vector<1x32xf32> to vector<1x16xf32>
    %199 = vector.shape_cast %197 : vector<8x1xi1> to vector<8x1xi1>
    %200 = vector.broadcast %199 : vector<8x1xi1> to vector<8x16xi1>
    %201 = vector.shape_cast %198 : vector<1x16xf32> to vector<1x16xf32>
    %202 = vector.broadcast %201 : vector<1x16xf32> to vector<8x16xf32>
    %203 = arith.select %200, %202, %164 : vector<8x16xi1>, vector<8x16xf32>
    %c3_i32_42 = arith.constant 3 : i32
    %204 = vector.broadcast %c3_i32_42 : i32 to vector<8x1xi32>
    %205 = arith.cmpi eq, %12, %204 : vector<8x1xi32>
    %206 = vector.extract_strided_slice %195 {offsets = [0, 16], sizes = [1, 16], strides = [1, 1]} : vector<1x32xf32> to vector<1x16xf32>
    %207 = vector.shape_cast %205 : vector<8x1xi1> to vector<8x1xi1>
    %208 = vector.broadcast %207 : vector<8x1xi1> to vector<8x16xi1>
    %209 = vector.shape_cast %206 : vector<1x16xf32> to vector<1x16xf32>
    %210 = vector.broadcast %209 : vector<1x16xf32> to vector<8x16xf32>
    %211 = arith.select %208, %210, %172 : vector<8x16xi1>, vector<8x16xf32>
    %212 = arith.truncf %195 : vector<1x32xf32> to vector<1x32xbf16>
    %c0_43 = arith.constant 0 : index
    %c0_44 = arith.constant 0 : index
    %213 = vector.load %arg2[%c0_43, %c0_44] : memref<32x128xbf16, #tpu.memory_space<vmem>>, vector<32x128xbf16>
    %cst_45 = arith.constant dense<0.000000e+00> : vector<1x128xf32>
    %214 = tpu.matmul %212, %213, %cst_45 {dimension_numbers = #tpu.dot_dimension_numbers<[1], [0], [0], [1], [0, 0, 1, 1], [], []>} : vector<1x32xbf16>, vector<32x128xbf16>, vector<1x128xf32> -> vector<1x128xf32>
    %215 = vector.extract_strided_slice %5 {offsets = [5, 0], sizes = [1, 128], strides = [1, 1]} : vector<8x128xf32> to vector<1x128xf32>
    %216 = arith.addf %214, %215 : vector<1x128xf32>
    %cst_46 = arith.constant 5.000000e-01 : f32
    %217 = vector.broadcast %cst_46 : f32 to vector<1x128xf32>
    %218 = arith.mulf %216, %217 : vector<1x128xf32>
    %219 = arith.select %11, %216, %218 : vector<1x128xi1>, vector<1x128xf32>
    %220 = math.tanh %219 : vector<1x128xf32>
    %cst_47 = arith.constant 5.000000e-01 : f32
    %221 = vector.broadcast %cst_47 : f32 to vector<1x128xf32>
    %222 = arith.mulf %221, %220 : vector<1x128xf32>
    %cst_48 = arith.constant 5.000000e-01 : f32
    %223 = vector.broadcast %cst_48 : f32 to vector<1x128xf32>
    %224 = arith.addf %222, %223 : vector<1x128xf32>
    %225 = arith.select %11, %220, %224 : vector<1x128xi1>, vector<1x128xf32>
    %226 = vector.extract_strided_slice %225 {offsets = [0, 0], sizes = [1, 32], strides = [1, 1]} : vector<1x128xf32> to vector<1x32xf32>
    %227 = vector.extract_strided_slice %225 {offsets = [0, 32], sizes = [1, 32], strides = [1, 1]} : vector<1x128xf32> to vector<1x32xf32>
    %228 = vector.extract_strided_slice %225 {offsets = [0, 64], sizes = [1, 32], strides = [1, 1]} : vector<1x128xf32> to vector<1x32xf32>
    %229 = vector.extract_strided_slice %225 {offsets = [0, 96], sizes = [1, 32], strides = [1, 1]} : vector<1x128xf32> to vector<1x32xf32>
    %230 = arith.mulf %227, %193 : vector<1x32xf32>
    %231 = arith.mulf %226, %228 : vector<1x32xf32>
    %232 = arith.addf %230, %231 : vector<1x32xf32>
    %233 = math.tanh %232 : vector<1x32xf32>
    %234 = arith.mulf %229, %233 : vector<1x32xf32>
    %c5_i32_49 = arith.constant 5 : i32
    %235 = vector.broadcast %c5_i32_49 : i32 to vector<8x1xi32>
    %236 = arith.cmpi eq, %12, %235 : vector<8x1xi32>
    %237 = vector.extract_strided_slice %234 {offsets = [0, 0], sizes = [1, 16], strides = [1, 1]} : vector<1x32xf32> to vector<1x16xf32>
    %238 = vector.shape_cast %236 : vector<8x1xi1> to vector<8x1xi1>
    %239 = vector.broadcast %238 : vector<8x1xi1> to vector<8x16xi1>
    %240 = vector.shape_cast %237 : vector<1x16xf32> to vector<1x16xf32>
    %241 = vector.broadcast %240 : vector<1x16xf32> to vector<8x16xf32>
    %242 = arith.select %239, %241, %203 : vector<8x16xi1>, vector<8x16xf32>
    %c2_i32_50 = arith.constant 2 : i32
    %243 = vector.broadcast %c2_i32_50 : i32 to vector<8x1xi32>
    %244 = arith.cmpi eq, %12, %243 : vector<8x1xi32>
    %245 = vector.extract_strided_slice %234 {offsets = [0, 16], sizes = [1, 16], strides = [1, 1]} : vector<1x32xf32> to vector<1x16xf32>
    %246 = vector.shape_cast %244 : vector<8x1xi1> to vector<8x1xi1>
    %247 = vector.broadcast %246 : vector<8x1xi1> to vector<8x16xi1>
    %248 = vector.shape_cast %245 : vector<1x16xf32> to vector<1x16xf32>
    %249 = vector.broadcast %248 : vector<1x16xf32> to vector<8x16xf32>
    %250 = arith.select %247, %249, %211 : vector<8x16xi1>, vector<8x16xf32>
    %251 = arith.truncf %234 : vector<1x32xf32> to vector<1x32xbf16>
    %c0_51 = arith.constant 0 : index
    %c0_52 = arith.constant 0 : index
    %252 = vector.load %arg2[%c0_51, %c0_52] : memref<32x128xbf16, #tpu.memory_space<vmem>>, vector<32x128xbf16>
    %cst_53 = arith.constant dense<0.000000e+00> : vector<1x128xf32>
    %253 = tpu.matmul %251, %252, %cst_53 {dimension_numbers = #tpu.dot_dimension_numbers<[1], [0], [0], [1], [0, 0, 1, 1], [], []>} : vector<1x32xbf16>, vector<32x128xbf16>, vector<1x128xf32> -> vector<1x128xf32>
    %254 = vector.extract_strided_slice %5 {offsets = [6, 0], sizes = [1, 128], strides = [1, 1]} : vector<8x128xf32> to vector<1x128xf32>
    %255 = arith.addf %253, %254 : vector<1x128xf32>
    %cst_54 = arith.constant 5.000000e-01 : f32
    %256 = vector.broadcast %cst_54 : f32 to vector<1x128xf32>
    %257 = arith.mulf %255, %256 : vector<1x128xf32>
    %258 = arith.select %11, %255, %257 : vector<1x128xi1>, vector<1x128xf32>
    %259 = math.tanh %258 : vector<1x128xf32>
    %cst_55 = arith.constant 5.000000e-01 : f32
    %260 = vector.broadcast %cst_55 : f32 to vector<1x128xf32>
    %261 = arith.mulf %260, %259 : vector<1x128xf32>
    %cst_56 = arith.constant 5.000000e-01 : f32
    %262 = vector.broadcast %cst_56 : f32 to vector<1x128xf32>
    %263 = arith.addf %261, %262 : vector<1x128xf32>
    %264 = arith.select %11, %259, %263 : vector<1x128xi1>, vector<1x128xf32>
    %265 = vector.extract_strided_slice %264 {offsets = [0, 0], sizes = [1, 32], strides = [1, 1]} : vector<1x128xf32> to vector<1x32xf32>
    %266 = vector.extract_strided_slice %264 {offsets = [0, 32], sizes = [1, 32], strides = [1, 1]} : vector<1x128xf32> to vector<1x32xf32>
    %267 = vector.extract_strided_slice %264 {offsets = [0, 64], sizes = [1, 32], strides = [1, 1]} : vector<1x128xf32> to vector<1x32xf32>
    %268 = vector.extract_strided_slice %264 {offsets = [0, 96], sizes = [1, 32], strides = [1, 1]} : vector<1x128xf32> to vector<1x32xf32>
    %269 = arith.mulf %266, %232 : vector<1x32xf32>
    %270 = arith.mulf %265, %267 : vector<1x32xf32>
    %271 = arith.addf %269, %270 : vector<1x32xf32>
    %272 = math.tanh %271 : vector<1x32xf32>
    %273 = arith.mulf %268, %272 : vector<1x32xf32>
    %c6_i32_57 = arith.constant 6 : i32
    %274 = vector.broadcast %c6_i32_57 : i32 to vector<8x1xi32>
    %275 = arith.cmpi eq, %12, %274 : vector<8x1xi32>
    %276 = vector.extract_strided_slice %273 {offsets = [0, 0], sizes = [1, 16], strides = [1, 1]} : vector<1x32xf32> to vector<1x16xf32>
    %277 = vector.shape_cast %275 : vector<8x1xi1> to vector<8x1xi1>
    %278 = vector.broadcast %277 : vector<8x1xi1> to vector<8x16xi1>
    %279 = vector.shape_cast %276 : vector<1x16xf32> to vector<1x16xf32>
    %280 = vector.broadcast %279 : vector<1x16xf32> to vector<8x16xf32>
    %281 = arith.select %278, %280, %242 : vector<8x16xi1>, vector<8x16xf32>
    %c1_i32_58 = arith.constant 1 : i32
    %282 = vector.broadcast %c1_i32_58 : i32 to vector<8x1xi32>
    %283 = arith.cmpi eq, %12, %282 : vector<8x1xi32>
    %284 = vector.extract_strided_slice %273 {offsets = [0, 16], sizes = [1, 16], strides = [1, 1]} : vector<1x32xf32> to vector<1x16xf32>
    %285 = vector.shape_cast %283 : vector<8x1xi1> to vector<8x1xi1>
    %286 = vector.broadcast %285 : vector<8x1xi1> to vector<8x16xi1>
    %287 = vector.shape_cast %284 : vector<1x16xf32> to vector<1x16xf32>
    %288 = vector.broadcast %287 : vector<1x16xf32> to vector<8x16xf32>
    %289 = arith.select %286, %288, %250 : vector<8x16xi1>, vector<8x16xf32>
    %290 = arith.truncf %273 : vector<1x32xf32> to vector<1x32xbf16>
    %c0_59 = arith.constant 0 : index
    %c0_60 = arith.constant 0 : index
    %291 = vector.load %arg2[%c0_59, %c0_60] : memref<32x128xbf16, #tpu.memory_space<vmem>>, vector<32x128xbf16>
    %cst_61 = arith.constant dense<0.000000e+00> : vector<1x128xf32>
    %292 = tpu.matmul %290, %291, %cst_61 {dimension_numbers = #tpu.dot_dimension_numbers<[1], [0], [0], [1], [0, 0, 1, 1], [], []>} : vector<1x32xbf16>, vector<32x128xbf16>, vector<1x128xf32> -> vector<1x128xf32>
    %293 = vector.extract_strided_slice %5 {offsets = [7, 0], sizes = [1, 128], strides = [1, 1]} : vector<8x128xf32> to vector<1x128xf32>
    %294 = arith.addf %292, %293 : vector<1x128xf32>
    %cst_62 = arith.constant 5.000000e-01 : f32
    %295 = vector.broadcast %cst_62 : f32 to vector<1x128xf32>
    %296 = arith.mulf %294, %295 : vector<1x128xf32>
    %297 = arith.select %11, %294, %296 : vector<1x128xi1>, vector<1x128xf32>
    %298 = math.tanh %297 : vector<1x128xf32>
    %cst_63 = arith.constant 5.000000e-01 : f32
    %299 = vector.broadcast %cst_63 : f32 to vector<1x128xf32>
    %300 = arith.mulf %299, %298 : vector<1x128xf32>
    %cst_64 = arith.constant 5.000000e-01 : f32
    %301 = vector.broadcast %cst_64 : f32 to vector<1x128xf32>
    %302 = arith.addf %300, %301 : vector<1x128xf32>
    %303 = arith.select %11, %298, %302 : vector<1x128xi1>, vector<1x128xf32>
    %304 = vector.extract_strided_slice %303 {offsets = [0, 0], sizes = [1, 32], strides = [1, 1]} : vector<1x128xf32> to vector<1x32xf32>
    %305 = vector.extract_strided_slice %303 {offsets = [0, 32], sizes = [1, 32], strides = [1, 1]} : vector<1x128xf32> to vector<1x32xf32>
    %306 = vector.extract_strided_slice %303 {offsets = [0, 64], sizes = [1, 32], strides = [1, 1]} : vector<1x128xf32> to vector<1x32xf32>
    %307 = vector.extract_strided_slice %303 {offsets = [0, 96], sizes = [1, 32], strides = [1, 1]} : vector<1x128xf32> to vector<1x32xf32>
    %308 = arith.mulf %305, %271 : vector<1x32xf32>
    %309 = arith.mulf %304, %306 : vector<1x32xf32>
    %310 = arith.addf %308, %309 : vector<1x32xf32>
    %311 = math.tanh %310 : vector<1x32xf32>
    %312 = arith.mulf %307, %311 : vector<1x32xf32>
    %c7_i32_65 = arith.constant 7 : i32
    %313 = vector.broadcast %c7_i32_65 : i32 to vector<8x1xi32>
    %314 = arith.cmpi eq, %12, %313 : vector<8x1xi32>
    %315 = vector.extract_strided_slice %312 {offsets = [0, 0], sizes = [1, 16], strides = [1, 1]} : vector<1x32xf32> to vector<1x16xf32>
    %316 = vector.shape_cast %314 : vector<8x1xi1> to vector<8x1xi1>
    %317 = vector.broadcast %316 : vector<8x1xi1> to vector<8x16xi1>
    %318 = vector.shape_cast %315 : vector<1x16xf32> to vector<1x16xf32>
    %319 = vector.broadcast %318 : vector<1x16xf32> to vector<8x16xf32>
    %320 = arith.select %317, %319, %281 : vector<8x16xi1>, vector<8x16xf32>
    %c0_i32_66 = arith.constant 0 : i32
    %321 = vector.broadcast %c0_i32_66 : i32 to vector<8x1xi32>
    %322 = arith.cmpi eq, %12, %321 : vector<8x1xi32>
    %323 = vector.extract_strided_slice %312 {offsets = [0, 16], sizes = [1, 16], strides = [1, 1]} : vector<1x32xf32> to vector<1x16xf32>
    %324 = vector.shape_cast %322 : vector<8x1xi1> to vector<8x1xi1>
    %325 = vector.broadcast %324 : vector<8x1xi1> to vector<8x16xi1>
    %326 = vector.shape_cast %323 : vector<1x16xf32> to vector<1x16xf32>
    %327 = vector.broadcast %326 : vector<1x16xf32> to vector<8x16xf32>
    %328 = arith.select %325, %327, %289 : vector<8x16xi1>, vector<8x16xf32>
    %329 = arith.truncf %320 : vector<8x16xf32> to vector<8x16xbf16>
    %c0_67 = arith.constant 0 : index
    %c0_68 = arith.constant 0 : index
    %330 = vector.load %arg4[%c0_67, %c0_68] : memref<32x6xbf16, #tpu.memory_space<vmem>>, vector<16x6xbf16>
    %cst_69 = arith.constant dense<0.000000e+00> : vector<8x6xf32>
    %331 = tpu.matmul %329, %330, %cst_69 {dimension_numbers = #tpu.dot_dimension_numbers<[1], [0], [0], [1], [0, 0, 1, 1], [], []>} : vector<8x16xbf16>, vector<16x6xbf16>, vector<8x6xf32> -> vector<8x6xf32>
    %332 = arith.truncf %328 : vector<8x16xf32> to vector<8x16xbf16>
    %c16 = arith.constant 16 : index
    %c0_70 = arith.constant 0 : index
    %333 = vector.load %arg4[%c16, %c0_70] : memref<32x6xbf16, #tpu.memory_space<vmem>>, vector<16x6xbf16>
    %cst_71 = arith.constant dense<0.000000e+00> : vector<8x6xf32>
    %334 = tpu.matmul %332, %333, %cst_71 {dimension_numbers = #tpu.dot_dimension_numbers<[1], [0], [0], [1], [0, 0, 1, 1], [], []>} : vector<8x16xbf16>, vector<16x6xbf16>, vector<8x6xf32> -> vector<8x6xf32>
    %335 = arith.addf %331, %334 : vector<8x6xf32>
    %c0_72 = arith.constant 0 : index
    %c0_73 = arith.constant 0 : index
    %336 = vector.load %arg5[%c0_72, %c0_73] : memref<1x6xf32, #tpu.memory_space<vmem>>, vector<1x6xf32>
    %337 = vector.broadcast %336 : vector<1x6xf32> to vector<8x6xf32>
    %338 = arith.addf %335, %337 : vector<8x6xf32>
    %c0_74 = arith.constant 0 : index
    %c0_75 = arith.constant 0 : index
    %339 = vector.load %arg6[%c0_74, %c0_75] : memref<6x6xf32, #tpu.memory_space<vmem>>, vector<6x6xf32>
    %c0_76 = arith.constant 0 : index
    %c0_77 = arith.constant 0 : index
    %340 = vector.load %arg7[%c0_76, %c0_77] : memref<6x6xf32, #tpu.memory_space<vmem>>, vector<6x6xf32>
    %341 = tpu.iota {dimensions = array<i32: 1>} : vector<1x6xi32>
    %342 = tpu.iota {dimensions = array<i32: 0>} : vector<6x1xi32>
    %343 = tpu.iota {dimensions = array<i32: 0>} : vector<6x6xi32>
    %344 = tpu.iota {dimensions = array<i32: 1>} : vector<6x6xi32>
    %345 = arith.cmpi eq, %343, %344 : vector<6x6xi32>
    %346 = vector.extract_strided_slice %338 {offsets = [1, 0], sizes = [1, 6], strides = [1, 1]} : vector<8x6xf32> to vector<1x6xf32>
    %cst_78 = arith.constant 0.000000e+00 : f32
    %347 = vector.shape_cast %346 : vector<1x6xf32> to vector<1x6xf32>
    %348 = vector.broadcast %347 : vector<1x6xf32> to vector<6x6xf32>
    %349 = vector.broadcast %cst_78 : f32 to vector<6x6xf32>
    %350 = arith.select %345, %348, %349 : vector<6x6xi1>, vector<6x6xf32>
    %cst_79 = arith.constant dense<0.000000e+00> : vector<6xf32>
    %351 = vector.multi_reduction <add>, %350, %cst_79 [1] : vector<6x6xf32> to vector<6xf32>
    %352 = vector.shape_cast %351 : vector<6xf32> to vector<6x1xf32>
    %353 = vector.extract_strided_slice %338 {offsets = [3, 0], sizes = [1, 6], strides = [1, 1]} : vector<8x6xf32> to vector<1x6xf32>
    %cst_80 = arith.constant 0.000000e+00 : f32
    %354 = vector.shape_cast %353 : vector<1x6xf32> to vector<1x6xf32>
    %355 = vector.broadcast %354 : vector<1x6xf32> to vector<6x6xf32>
    %356 = vector.broadcast %cst_80 : f32 to vector<6x6xf32>
    %357 = arith.select %345, %355, %356 : vector<6x6xi1>, vector<6x6xf32>
    %cst_81 = arith.constant dense<0.000000e+00> : vector<6xf32>
    %358 = vector.multi_reduction <add>, %357, %cst_81 [1] : vector<6x6xf32> to vector<6xf32>
    %359 = vector.shape_cast %358 : vector<6xf32> to vector<6x1xf32>
    %360 = vector.extract_strided_slice %338 {offsets = [5, 0], sizes = [1, 6], strides = [1, 1]} : vector<8x6xf32> to vector<1x6xf32>
    %cst_82 = arith.constant 0.000000e+00 : f32
    %361 = vector.shape_cast %360 : vector<1x6xf32> to vector<1x6xf32>
    %362 = vector.broadcast %361 : vector<1x6xf32> to vector<6x6xf32>
    %363 = vector.broadcast %cst_82 : f32 to vector<6x6xf32>
    %364 = arith.select %345, %362, %363 : vector<6x6xi1>, vector<6x6xf32>
    %cst_83 = arith.constant dense<0.000000e+00> : vector<6xf32>
    %365 = vector.multi_reduction <add>, %364, %cst_83 [1] : vector<6x6xf32> to vector<6xf32>
    %366 = vector.shape_cast %365 : vector<6xf32> to vector<6x1xf32>
    %367 = vector.extract_strided_slice %338 {offsets = [7, 0], sizes = [1, 6], strides = [1, 1]} : vector<8x6xf32> to vector<1x6xf32>
    %cst_84 = arith.constant 0.000000e+00 : f32
    %368 = vector.shape_cast %367 : vector<1x6xf32> to vector<1x6xf32>
    %369 = vector.broadcast %368 : vector<1x6xf32> to vector<6x6xf32>
    %370 = vector.broadcast %cst_84 : f32 to vector<6x6xf32>
    %371 = arith.select %345, %369, %370 : vector<6x6xi1>, vector<6x6xf32>
    %cst_85 = arith.constant dense<0.000000e+00> : vector<6xf32>
    %372 = vector.multi_reduction <add>, %371, %cst_85 [1] : vector<6x6xf32> to vector<6xf32>
    %373 = vector.shape_cast %372 : vector<6xf32> to vector<6x1xf32>
    %c5_i32_86 = arith.constant 5 : i32
    %374 = vector.broadcast %c5_i32_86 : i32 to vector<6x1xi32>
    %375 = arith.cmpi eq, %342, %374 : vector<6x1xi32>
    %cst_87 = arith.constant 0.000000e+00 : f32
    %cst_88 = arith.constant -1.000000e+04 : f32
    %376 = vector.broadcast %cst_87 : f32 to vector<6x1xf32>
    %377 = vector.broadcast %cst_88 : f32 to vector<6x1xf32>
    %378 = arith.select %375, %376, %377 : vector<6x1xi1>, vector<6x1xf32>
    %379 = vector.broadcast %378 : vector<6x1xf32> to vector<6x6xf32>
    %380 = arith.addf %379, %340 : vector<6x6xf32>
    %cst_89 = arith.constant dense<0xFF800000> : vector<6xf32>
    %381 = vector.multi_reduction <maximumf>, %380, %cst_89 [0] : vector<6x6xf32> to vector<6xf32>
    %382 = vector.shape_cast %381 : vector<6xf32> to vector<1x6xf32>
    %383 = vector.extract_strided_slice %338 {offsets = [0, 0], sizes = [1, 6], strides = [1, 1]} : vector<8x6xf32> to vector<1x6xf32>
    %384 = arith.addf %382, %383 : vector<1x6xf32>
    %385 = vector.broadcast %384 : vector<1x6xf32> to vector<6x6xf32>
    %386 = arith.addf %385, %339 : vector<6x6xf32>
    %cst_90 = arith.constant dense<0xFF800000> : vector<6xf32>
    %387 = vector.multi_reduction <maximumf>, %386, %cst_90 [1] : vector<6x6xf32> to vector<6xf32>
    %388 = vector.shape_cast %387 : vector<6xf32> to vector<6x1xf32>
    %389 = vector.broadcast %388 : vector<6x1xf32> to vector<6x6xf32>
    %390 = arith.cmpf oeq, %386, %389 : vector<6x6xf32>
    %c6_i32_91 = arith.constant 6 : i32
    %391 = vector.broadcast %c6_i32_91 : i32 to vector<6x6xi32>
    %392 = arith.select %390, %344, %391 : vector<6x6xi1>, vector<6x6xi32>
    %cst_92 = arith.constant dense<2147483647> : vector<6xi32>
    %393 = vector.multi_reduction <minsi>, %392, %cst_92 [1] : vector<6x6xi32> to vector<6xi32>
    %394 = vector.shape_cast %393 : vector<6xi32> to vector<6x1xi32>
    %395 = arith.addf %388, %352 : vector<6x1xf32>
    %396 = vector.broadcast %395 : vector<6x1xf32> to vector<6x6xf32>
    %397 = arith.addf %396, %340 : vector<6x6xf32>
    %cst_93 = arith.constant dense<0xFF800000> : vector<6xf32>
    %398 = vector.multi_reduction <maximumf>, %397, %cst_93 [0] : vector<6x6xf32> to vector<6xf32>
    %399 = vector.shape_cast %398 : vector<6xf32> to vector<1x6xf32>
    %400 = vector.broadcast %399 : vector<1x6xf32> to vector<6x6xf32>
    %401 = arith.cmpf oeq, %397, %400 : vector<6x6xf32>
    %c6_i32_94 = arith.constant 6 : i32
    %402 = vector.broadcast %c6_i32_94 : i32 to vector<6x6xi32>
    %403 = arith.select %401, %343, %402 : vector<6x6xi1>, vector<6x6xi32>
    %cst_95 = arith.constant dense<2147483647> : vector<6xi32>
    %404 = vector.multi_reduction <minsi>, %403, %cst_95 [0] : vector<6x6xi32> to vector<6xi32>
    %405 = vector.shape_cast %404 : vector<6xi32> to vector<1x6xi32>
    %406 = vector.extract_strided_slice %338 {offsets = [2, 0], sizes = [1, 6], strides = [1, 1]} : vector<8x6xf32> to vector<1x6xf32>
    %407 = arith.addf %399, %406 : vector<1x6xf32>
    %408 = vector.broadcast %407 : vector<1x6xf32> to vector<6x6xf32>
    %409 = arith.addf %408, %339 : vector<6x6xf32>
    %cst_96 = arith.constant dense<0xFF800000> : vector<6xf32>
    %410 = vector.multi_reduction <maximumf>, %409, %cst_96 [1] : vector<6x6xf32> to vector<6xf32>
    %411 = vector.shape_cast %410 : vector<6xf32> to vector<6x1xf32>
    %412 = vector.broadcast %411 : vector<6x1xf32> to vector<6x6xf32>
    %413 = arith.cmpf oeq, %409, %412 : vector<6x6xf32>
    %c6_i32_97 = arith.constant 6 : i32
    %414 = vector.broadcast %c6_i32_97 : i32 to vector<6x6xi32>
    %415 = arith.select %413, %344, %414 : vector<6x6xi1>, vector<6x6xi32>
    %cst_98 = arith.constant dense<2147483647> : vector<6xi32>
    %416 = vector.multi_reduction <minsi>, %415, %cst_98 [1] : vector<6x6xi32> to vector<6xi32>
    %417 = vector.shape_cast %416 : vector<6xi32> to vector<6x1xi32>
    %418 = arith.addf %411, %359 : vector<6x1xf32>
    %419 = vector.broadcast %418 : vector<6x1xf32> to vector<6x6xf32>
    %420 = arith.addf %419, %340 : vector<6x6xf32>
    %cst_99 = arith.constant dense<0xFF800000> : vector<6xf32>
    %421 = vector.multi_reduction <maximumf>, %420, %cst_99 [0] : vector<6x6xf32> to vector<6xf32>
    %422 = vector.shape_cast %421 : vector<6xf32> to vector<1x6xf32>
    %423 = vector.broadcast %422 : vector<1x6xf32> to vector<6x6xf32>
    %424 = arith.cmpf oeq, %420, %423 : vector<6x6xf32>
    %c6_i32_100 = arith.constant 6 : i32
    %425 = vector.broadcast %c6_i32_100 : i32 to vector<6x6xi32>
    %426 = arith.select %424, %343, %425 : vector<6x6xi1>, vector<6x6xi32>
    %cst_101 = arith.constant dense<2147483647> : vector<6xi32>
    %427 = vector.multi_reduction <minsi>, %426, %cst_101 [0] : vector<6x6xi32> to vector<6xi32>
    %428 = vector.shape_cast %427 : vector<6xi32> to vector<1x6xi32>
    %429 = vector.extract_strided_slice %338 {offsets = [4, 0], sizes = [1, 6], strides = [1, 1]} : vector<8x6xf32> to vector<1x6xf32>
    %430 = arith.addf %422, %429 : vector<1x6xf32>
    %431 = vector.broadcast %430 : vector<1x6xf32> to vector<6x6xf32>
    %432 = arith.addf %431, %339 : vector<6x6xf32>
    %cst_102 = arith.constant dense<0xFF800000> : vector<6xf32>
    %433 = vector.multi_reduction <maximumf>, %432, %cst_102 [1] : vector<6x6xf32> to vector<6xf32>
    %434 = vector.shape_cast %433 : vector<6xf32> to vector<6x1xf32>
    %435 = vector.broadcast %434 : vector<6x1xf32> to vector<6x6xf32>
    %436 = arith.cmpf oeq, %432, %435 : vector<6x6xf32>
    %c6_i32_103 = arith.constant 6 : i32
    %437 = vector.broadcast %c6_i32_103 : i32 to vector<6x6xi32>
    %438 = arith.select %436, %344, %437 : vector<6x6xi1>, vector<6x6xi32>
    %cst_104 = arith.constant dense<2147483647> : vector<6xi32>
    %439 = vector.multi_reduction <minsi>, %438, %cst_104 [1] : vector<6x6xi32> to vector<6xi32>
    %440 = vector.shape_cast %439 : vector<6xi32> to vector<6x1xi32>
    %441 = arith.addf %434, %366 : vector<6x1xf32>
    %442 = vector.broadcast %441 : vector<6x1xf32> to vector<6x6xf32>
    %443 = arith.addf %442, %340 : vector<6x6xf32>
    %cst_105 = arith.constant dense<0xFF800000> : vector<6xf32>
    %444 = vector.multi_reduction <maximumf>, %443, %cst_105 [0] : vector<6x6xf32> to vector<6xf32>
    %445 = vector.shape_cast %444 : vector<6xf32> to vector<1x6xf32>
    %446 = vector.broadcast %445 : vector<1x6xf32> to vector<6x6xf32>
    %447 = arith.cmpf oeq, %443, %446 : vector<6x6xf32>
    %c6_i32_106 = arith.constant 6 : i32
    %448 = vector.broadcast %c6_i32_106 : i32 to vector<6x6xi32>
    %449 = arith.select %447, %343, %448 : vector<6x6xi1>, vector<6x6xi32>
    %cst_107 = arith.constant dense<2147483647> : vector<6xi32>
    %450 = vector.multi_reduction <minsi>, %449, %cst_107 [0] : vector<6x6xi32> to vector<6xi32>
    %451 = vector.shape_cast %450 : vector<6xi32> to vector<1x6xi32>
    %452 = vector.extract_strided_slice %338 {offsets = [6, 0], sizes = [1, 6], strides = [1, 1]} : vector<8x6xf32> to vector<1x6xf32>
    %453 = arith.addf %445, %452 : vector<1x6xf32>
    %454 = vector.broadcast %453 : vector<1x6xf32> to vector<6x6xf32>
    %455 = arith.addf %454, %339 : vector<6x6xf32>
    %cst_108 = arith.constant dense<0xFF800000> : vector<6xf32>
    %456 = vector.multi_reduction <maximumf>, %455, %cst_108 [1] : vector<6x6xf32> to vector<6xf32>
    %457 = vector.shape_cast %456 : vector<6xf32> to vector<6x1xf32>
    %458 = vector.broadcast %457 : vector<6x1xf32> to vector<6x6xf32>
    %459 = arith.cmpf oeq, %455, %458 : vector<6x6xf32>
    %c6_i32_109 = arith.constant 6 : i32
    %460 = vector.broadcast %c6_i32_109 : i32 to vector<6x6xi32>
    %461 = arith.select %459, %344, %460 : vector<6x6xi1>, vector<6x6xi32>
    %cst_110 = arith.constant dense<2147483647> : vector<6xi32>
    %462 = vector.multi_reduction <minsi>, %461, %cst_110 [1] : vector<6x6xi32> to vector<6xi32>
    %463 = vector.shape_cast %462 : vector<6xi32> to vector<6x1xi32>
    %464 = arith.addf %457, %373 : vector<6x1xf32>
    %c0_111 = arith.constant 0 : index
    %c0_112 = arith.constant 0 : index
    %465 = vector.load %arg8[%c0_111, %c0_112] : memref<6x1xf32, #tpu.memory_space<vmem>>, vector<6x1xf32>
    %466 = arith.addf %464, %465 : vector<6x1xf32>
    %cst_113 = arith.constant dense<0xFF800000> : vector<1xf32>
    %467 = vector.multi_reduction <maximumf>, %466, %cst_113 [0] : vector<6x1xf32> to vector<1xf32>
    %468 = vector.shape_cast %467 : vector<1xf32> to vector<1x1xf32>
    %469 = vector.broadcast %468 : vector<1x1xf32> to vector<6x1xf32>
    %470 = arith.cmpf oeq, %466, %469 : vector<6x1xf32>
    %c6_i32_114 = arith.constant 6 : i32
    %471 = vector.broadcast %c6_i32_114 : i32 to vector<6x1xi32>
    %472 = arith.select %470, %342, %471 : vector<6x1xi1>, vector<6x1xi32>
    %cst_115 = arith.constant dense<2147483647> : vector<1xi32>
    %473 = vector.multi_reduction <minsi>, %472, %cst_115 [0] : vector<6x1xi32> to vector<1xi32>
    %474 = vector.shape_cast %473 : vector<1xi32> to vector<1x1xi32>
    %c0_116 = arith.constant 0 : index
    %c0_117 = arith.constant 0 : index
    %475 = vector.load %arg11[%c0_116, %c0_117] : memref<1x1xf32, #tpu.memory_space<vmem>>, vector<1x1xf32>
    tpu.vector_store %arg11[%c0_116, %c0_117], %468 {strides = array<i32>} : memref<1x1xf32, #tpu.memory_space<vmem>>, vector<1x1xf32>,
    %476 = tpu.iota {dimensions = array<i32: 1>} : vector<1x8xi32>
    %c7_i32_118 = arith.constant 7 : i32
    %477 = vector.broadcast %c7_i32_118 : i32 to vector<1x8xi32>
    %478 = arith.cmpi eq, %476, %477 : vector<1x8xi32>
    %c0_i32_119 = arith.constant 0 : i32
    %479 = vector.shape_cast %474 : vector<1x1xi32> to vector<1x1xi32>
    %480 = vector.broadcast %479 : vector<1x1xi32> to vector<1x8xi32>
    %481 = vector.broadcast %c0_i32_119 : i32 to vector<1x8xi32>
    %482 = arith.select %478, %480, %481 : vector<1x8xi1>, vector<1x8xi32>
    %483 = vector.broadcast %474 : vector<1x1xi32> to vector<6x1xi32>
    %484 = arith.cmpi eq, %342, %483 : vector<6x1xi32>
    %c0_i32_120 = arith.constant 0 : i32
    %485 = vector.broadcast %c0_i32_120 : i32 to vector<6x1xi32>
    %486 = arith.select %484, %463, %485 : vector<6x1xi1>, vector<6x1xi32>
    %cst_121 = arith.constant dense<0> : vector<1xi32>
    %487 = vector.multi_reduction <add>, %486, %cst_121 [0] : vector<6x1xi32> to vector<1xi32>
    %488 = vector.shape_cast %487 : vector<1xi32> to vector<1x1xi32>
    %c6_i32_122 = arith.constant 6 : i32
    %489 = vector.broadcast %c6_i32_122 : i32 to vector<1x8xi32>
    %490 = arith.cmpi eq, %476, %489 : vector<1x8xi32>
    %491 = vector.shape_cast %488 : vector<1x1xi32> to vector<1x1xi32>
    %492 = vector.broadcast %491 : vector<1x1xi32> to vector<1x8xi32>
    %493 = arith.select %490, %492, %482 : vector<1x8xi1>, vector<1x8xi32>
    %494 = vector.broadcast %488 : vector<1x1xi32> to vector<1x6xi32>
    %495 = arith.cmpi eq, %341, %494 : vector<1x6xi32>
    %c0_i32_123 = arith.constant 0 : i32
    %496 = vector.broadcast %c0_i32_123 : i32 to vector<1x6xi32>
    %497 = arith.select %495, %451, %496 : vector<1x6xi1>, vector<1x6xi32>
    %cst_124 = arith.constant dense<0> : vector<1xi32>
    %498 = vector.multi_reduction <add>, %497, %cst_124 [1] : vector<1x6xi32> to vector<1xi32>
    %499 = vector.shape_cast %498 : vector<1xi32> to vector<1x1xi32>
    %c5_i32_125 = arith.constant 5 : i32
    %500 = vector.broadcast %c5_i32_125 : i32 to vector<1x8xi32>
    %501 = arith.cmpi eq, %476, %500 : vector<1x8xi32>
    %502 = vector.shape_cast %499 : vector<1x1xi32> to vector<1x1xi32>
    %503 = vector.broadcast %502 : vector<1x1xi32> to vector<1x8xi32>
    %504 = arith.select %501, %503, %493 : vector<1x8xi1>, vector<1x8xi32>
    %505 = vector.broadcast %499 : vector<1x1xi32> to vector<6x1xi32>
    %506 = arith.cmpi eq, %342, %505 : vector<6x1xi32>
    %c0_i32_126 = arith.constant 0 : i32
    %507 = vector.broadcast %c0_i32_126 : i32 to vector<6x1xi32>
    %508 = arith.select %506, %440, %507 : vector<6x1xi1>, vector<6x1xi32>
    %cst_127 = arith.constant dense<0> : vector<1xi32>
    %509 = vector.multi_reduction <add>, %508, %cst_127 [0] : vector<6x1xi32> to vector<1xi32>
    %510 = vector.shape_cast %509 : vector<1xi32> to vector<1x1xi32>
    %c4_i32_128 = arith.constant 4 : i32
    %511 = vector.broadcast %c4_i32_128 : i32 to vector<1x8xi32>
    %512 = arith.cmpi eq, %476, %511 : vector<1x8xi32>
    %513 = vector.shape_cast %510 : vector<1x1xi32> to vector<1x1xi32>
    %514 = vector.broadcast %513 : vector<1x1xi32> to vector<1x8xi32>
    %515 = arith.select %512, %514, %504 : vector<1x8xi1>, vector<1x8xi32>
    %516 = vector.broadcast %510 : vector<1x1xi32> to vector<1x6xi32>
    %517 = arith.cmpi eq, %341, %516 : vector<1x6xi32>
    %c0_i32_129 = arith.constant 0 : i32
    %518 = vector.broadcast %c0_i32_129 : i32 to vector<1x6xi32>
    %519 = arith.select %517, %428, %518 : vector<1x6xi1>, vector<1x6xi32>
    %cst_130 = arith.constant dense<0> : vector<1xi32>
    %520 = vector.multi_reduction <add>, %519, %cst_130 [1] : vector<1x6xi32> to vector<1xi32>
    %521 = vector.shape_cast %520 : vector<1xi32> to vector<1x1xi32>
    %c3_i32_131 = arith.constant 3 : i32
    %522 = vector.broadcast %c3_i32_131 : i32 to vector<1x8xi32>
    %523 = arith.cmpi eq, %476, %522 : vector<1x8xi32>
    %524 = vector.shape_cast %521 : vector<1x1xi32> to vector<1x1xi32>
    %525 = vector.broadcast %524 : vector<1x1xi32> to vector<1x8xi32>
    %526 = arith.select %523, %525, %515 : vector<1x8xi1>, vector<1x8xi32>
    %527 = vector.broadcast %521 : vector<1x1xi32> to vector<6x1xi32>
    %528 = arith.cmpi eq, %342, %527 : vector<6x1xi32>
    %c0_i32_132 = arith.constant 0 : i32
    %529 = vector.broadcast %c0_i32_132 : i32 to vector<6x1xi32>
    %530 = arith.select %528, %417, %529 : vector<6x1xi1>, vector<6x1xi32>
    %cst_133 = arith.constant dense<0> : vector<1xi32>
    %531 = vector.multi_reduction <add>, %530, %cst_133 [0] : vector<6x1xi32> to vector<1xi32>
    %532 = vector.shape_cast %531 : vector<1xi32> to vector<1x1xi32>
    %c2_i32_134 = arith.constant 2 : i32
    %533 = vector.broadcast %c2_i32_134 : i32 to vector<1x8xi32>
    %534 = arith.cmpi eq, %476, %533 : vector<1x8xi32>
    %535 = vector.shape_cast %532 : vector<1x1xi32> to vector<1x1xi32>
    %536 = vector.broadcast %535 : vector<1x1xi32> to vector<1x8xi32>
    %537 = arith.select %534, %536, %526 : vector<1x8xi1>, vector<1x8xi32>
    %538 = vector.broadcast %532 : vector<1x1xi32> to vector<1x6xi32>
    %539 = arith.cmpi eq, %341, %538 : vector<1x6xi32>
    %c0_i32_135 = arith.constant 0 : i32
    %540 = vector.broadcast %c0_i32_135 : i32 to vector<1x6xi32>
    %541 = arith.select %539, %405, %540 : vector<1x6xi1>, vector<1x6xi32>
    %cst_136 = arith.constant dense<0> : vector<1xi32>
    %542 = vector.multi_reduction <add>, %541, %cst_136 [1] : vector<1x6xi32> to vector<1xi32>
    %543 = vector.shape_cast %542 : vector<1xi32> to vector<1x1xi32>
    %c1_i32_137 = arith.constant 1 : i32
    %544 = vector.broadcast %c1_i32_137 : i32 to vector<1x8xi32>
    %545 = arith.cmpi eq, %476, %544 : vector<1x8xi32>
    %546 = vector.shape_cast %543 : vector<1x1xi32> to vector<1x1xi32>
    %547 = vector.broadcast %546 : vector<1x1xi32> to vector<1x8xi32>
    %548 = arith.select %545, %547, %537 : vector<1x8xi1>, vector<1x8xi32>
    %549 = vector.broadcast %543 : vector<1x1xi32> to vector<6x1xi32>
    %550 = arith.cmpi eq, %342, %549 : vector<6x1xi32>
    %c0_i32_138 = arith.constant 0 : i32
    %551 = vector.broadcast %c0_i32_138 : i32 to vector<6x1xi32>
    %552 = arith.select %550, %394, %551 : vector<6x1xi1>, vector<6x1xi32>
    %cst_139 = arith.constant dense<0> : vector<1xi32>
    %553 = vector.multi_reduction <add>, %552, %cst_139 [0] : vector<6x1xi32> to vector<1xi32>
    %554 = vector.shape_cast %553 : vector<1xi32> to vector<1x1xi32>
    %c0_i32_140 = arith.constant 0 : i32
    %555 = vector.broadcast %c0_i32_140 : i32 to vector<1x8xi32>
    %556 = arith.cmpi eq, %476, %555 : vector<1x8xi32>
    %557 = vector.shape_cast %554 : vector<1x1xi32> to vector<1x1xi32>
    %558 = vector.broadcast %557 : vector<1x1xi32> to vector<1x8xi32>
    %559 = arith.select %556, %558, %548 : vector<1x8xi1>, vector<1x8xi32>
    %c0_141 = arith.constant 0 : index
    %c0_142 = arith.constant 0 : index
    %560 = vector.load %arg12[%c0_141, %c0_142] : memref<1x8xi32, #tpu.memory_space<vmem>>, vector<1x8xi32>
    tpu.vector_store %arg12[%c0_141, %c0_142], %559 {strides = array<i32>} : memref<1x8xi32, #tpu.memory_space<vmem>>, vector<1x8xi32>,
    return
  }
}

</mosaic_0001>

<llo_original>
// kernel: bilstm_crf_forward.1
$region0: #{bilstm_crf_forward.1}
  #allocation0 [shape = 'u32[]', space=smem, size = 0x4, offset = 0x4, fixed_abs, tag = 'smem constant byte address 0x4 - core index']
  #allocation1 [shape = 'u32[144,128]{1,0:T(1,128)}', space=vmem, size = 0x12000, scoped, tag = 'internal scratch']
  %s0 = inlined_call_operand.vmem [shape: bf16[8,32], index: 0, kind: input, shape index: {}]
  %s1 = inlined_call_operand.vmem [shape: bf16[32,128], index: 1, kind: input, shape index: {}]
  %s2 = inlined_call_operand.vmem [shape: bf16[32,128], index: 2, kind: input, shape index: {}]
  %s3 = inlined_call_operand.vmem [shape: f32[1,128], index: 3, kind: input, shape index: {}]
  %s4 = inlined_call_operand.vmem [shape: bf16[32,6], index: 4, kind: input, shape index: {}]
  %s5 = inlined_call_operand.vmem [shape: f32[1,6], index: 5, kind: input, shape index: {}]
  %s6 = inlined_call_operand.vmem [shape: f32[6,6], index: 6, kind: input, shape index: {}]
  %s7 = inlined_call_operand.vmem [shape: f32[6,6], index: 7, kind: input, shape index: {}]
  %s8 = inlined_call_operand.vmem [shape: f32[6,1], index: 8, kind: input, shape index: {}]
  %s9 = inlined_call_operand.vmem [shape: f32[1,32], index: 9, kind: input, shape index: {}]
  %s10 = inlined_call_operand.vmem [shape: f32[1,32], index: 10, kind: input, shape index: {}]
  %s11 = inlined_call_operand.hbm [shape: f32[1,1], index: 11, kind: output, shape index: {0}]
  %s12 = inlined_call_operand.hbm [shape: s32[1,8], index: 12, kind: output, shape index: {1}]
  %13 = xla_tuple %s11, %s12
  %s14 = sld [smem:[#allocation0]]
  $region62: #{bilstm_crf_forward.1} parent=0
    _
  %s16 = ssub.s32 1, %s14
  %s17 = scalar_select 0, %s16, %s14
  $region1: #{bilstm_crf_forward.1} parent=0
    #allocation2 [shape = 'u8[512]{0}', space=vmem, size = 0x400, scoped, tag = 'output window, operand 0, single buffered']
    #allocation3 [shape = 's32[1]{0}', space=sflag, size = 0x4, scoped, tag = 'scoped memory for bilstm_crf_forward.1']
    #allocation4 [shape = 'u8[512]{0}', space=vmem, size = 0x400, scoped, tag = 'output window, operand 1, single buffered']
    #allocation5 [shape = 's32[1]{0}', space=sflag, size = 0x4, scoped, tag = 'scoped memory for bilstm_crf_forward.1']
    %18 = vsyncpa [#allocation3], 0
    %19 = vsyncpa [#allocation5], 0
    // Predicated region
    $region2: #{bilstm_crf_forward.1} parent=1 // pred_check
      _
    $region3: #{bilstm_crf_forward.1} parent=1 // pred_check_branch
      %21 = sbr.rel (0) target = $region5
    $region4: #{bilstm_crf_forward.1} parent=1 // pred_region
      _
    $region5: #{bilstm_crf_forward.1} parent=1 // pred_fallthru
      _
    // Predicated region
    $region6: #{bilstm_crf_forward.1} parent=1 // pred_check
      _
    $region7: #{bilstm_crf_forward.1} parent=1 // pred_check_branch
      %23 = sbr.rel (0) target = $region9
    $region8: #{bilstm_crf_forward.1} parent=1 // pred_region
      _
    $region9: #{bilstm_crf_forward.1} parent=1 // pred_fallthru
      _
    // Predicated region
    $region10: #{bilstm_crf_forward.1} parent=1 // pred_check
      _
    $region11: #{bilstm_crf_forward.1} parent=1 // pred_check_branch
      %25 = sbr.rel (0) target = $region13
    $region12: #{bilstm_crf_forward.1} parent=1 // pred_region
      _
    $region13: #{bilstm_crf_forward.1} parent=1 // pred_fallthru
      _
    // Predicated region
    $region14: #{bilstm_crf_forward.1} parent=1 // pred_check
      _
    $region15: #{bilstm_crf_forward.1} parent=1 // pred_check_branch
      %27 = sbr.rel (0) target = $region17
    $region16: #{bilstm_crf_forward.1} parent=1 // pred_region
      _
    $region17: #{bilstm_crf_forward.1} parent=1 // pred_fallthru
      _
    // Predicated region
    $region18: #{bilstm_crf_forward.1} parent=1 // pred_check
      _
    $region19: #{bilstm_crf_forward.1} parent=1 // pred_check_branch
      %29 = sbr.rel (0) target = $region21
    $region20: #{bilstm_crf_forward.1} parent=1 // pred_region
      _
    $region21: #{bilstm_crf_forward.1} parent=1 // pred_fallthru
      _
    // Predicated region
    $region22: #{bilstm_crf_forward.1} parent=1 // pred_check
      _
    $region23: #{bilstm_crf_forward.1} parent=1 // pred_check_branch
      %31 = sbr.rel (0) target = $region25
    $region24: #{bilstm_crf_forward.1} parent=1 // pred_region
      _
    $region25: #{bilstm_crf_forward.1} parent=1 // pred_fallthru
      _
    // Predicated region
    $region26: #{bilstm_crf_forward.1} parent=1 // pred_check
      _
    $region27: #{bilstm_crf_forward.1} parent=1 // pred_check_branch
      %33 = sbr.rel (0) target = $region29
    $region28: #{bilstm_crf_forward.1} parent=1 // pred_region
      _
    $region29: #{bilstm_crf_forward.1} parent=1 // pred_fallthru
      _
    // Predicated region
    $region30: #{bilstm_crf_forward.1} parent=1 // pred_check
      _
    $region31: #{bilstm_crf_forward.1} parent=1 // pred_check_branch
      %35 = sbr.rel (0) target = $region33
    $region32: #{bilstm_crf_forward.1} parent=1 // pred_region
      _
    $region33: #{bilstm_crf_forward.1} parent=1 // pred_fallthru
      _
    // Predicated region
    $region34: #{bilstm_crf_forward.1} parent=1 // pred_check
      _
    $region35: #{bilstm_crf_forward.1} parent=1 // pred_check_branch
      %37 = sbr.rel (0) target = $region37
    $region36: #{bilstm_crf_forward.1} parent=1 // pred_region
      _
    $region37: #{bilstm_crf_forward.1} parent=1 // pred_fallthru
      _
    // Predicated region
    $region38: #{bilstm_crf_forward.1} parent=1 // pred_check
      _
    $region39: #{bilstm_crf_forward.1} parent=1 // pred_check_branch
      %39 = sbr.rel (0) target = $region41
    $region40: #{bilstm_crf_forward.1} parent=1 // pred_region
      _
    $region41: #{bilstm_crf_forward.1} parent=1 // pred_fallthru
      _
    // Predicated region
    $region42: #{bilstm_crf_forward.1} parent=1 // pred_check
      _
    $region43: #{bilstm_crf_forward.1} parent=1 // pred_check_branch
      %41 = sbr.rel (0) target = $region45
    $region44: #{bilstm_crf_forward.1} parent=1 // pred_region
      _
    $region45: #{bilstm_crf_forward.1} parent=1 // pred_fallthru
      _
    %v43 = vld [vmem:[%s0] sm:$0xf]
    %v44 = vld [vmem:[%s1] sm:$0xf]
    %v45 = vld [vmem:[%s1 + $0x4] sm:$0xf]
    %v46 = vld [vmem:[%s1 + $0x8] sm:$0xf]
    %v47 = vld [vmem:[%s1 + $0xc] sm:$0xf]
    %v48 = vld [vmem:[%s3] sm:$0x1]
    %v50 = vlaneseq
    %v51 = vshrl.u32 %v50, 7
    %v52 = vsub.s32 0, %v51
    %v53 = vrot.slane %v48, %v52
    %v59 = vunpack.c.l.b16 %v44
    %v60 = vunpack.c.l.b16 %v45
    %v61 = vunpack.c.l.b16 %v46
    %v62 = vunpack.c.l.b16 %v47
    %v63 = vpack.c.b16 %v60, %v59
    %v64 = vpack.c.b16 %v62, %v61
    %vm67 = vcmask 261120
    %v69 = vsel %vm67, %v43, 0
    %71 = vmatprep.subr.bf16.mxu0 0
    %72 = vmatpush1.bf16.msra.mxu0 %v63
    %73 = vmatprep.subr.bf16.mxu0 0
    %74 = vmatpush1.bf16.msra.mxu0 %v64
    %75 = vmatprep.subr.bf16.mxu0 0
    %76 = vmatpush1.bf16.msra.mxu0 0
    %77 = vmatprep.subr.bf16.mxu0 0
    %78 = vmatpush1.bf16.msra.mxu0 0
    %79 = vmatprep.subr.bf16.mxu0 0
    %80 = vmatpush1.bf16.msra.mxu0 0
    %81 = vmatprep.subr.bf16.mxu0 0
    %82 = vmatpush1.bf16.msra.mxu0 0
    %83 = vmatprep.subr.bf16.mxu0 0
    %84 = vmatpush1.bf16.msra.mxu0 0
    %85 = vmatprep.subr.bf16.mxu0 0
    %86 = vmatpush1.bf16.msra.mxu0 0
    %87 = vmatprep.subr.bf16.mxu0 0
    %88 = vmatpush1.bf16.msra.mxu0 0
    %89 = vmatprep.subr.bf16.mxu0 0
    %90 = vmatpush1.bf16.msra.mxu0 0
    %91 = vmatprep.subr.bf16.mxu0 0
    %92 = vmatpush1.bf16.msra.mxu0 0
    %93 = vmatprep.subr.bf16.mxu0 0
    %94 = vmatpush1.bf16.msra.mxu0 0
    %95 = vmatprep.subr.bf16.mxu0 0
    %96 = vmatpush1.bf16.msra.mxu0 0
    %97 = vmatprep.subr.bf16.mxu0 0
    %98 = vmatpush1.bf16.msra.mxu0 0
    %99 = vmatprep.subr.bf16.mxu0 0
    %100 = vmatpush1.bf16.msra.mxu0 0
    %101 = vmatprep.subr.bf16.mxu0 0
    %102 = vmatpush1.bf16.msra.mxu0 0
    %103 = vmatprep.mubr.bf16.mxu0 0
    %104 = vmatmul.mubr.bf16.gmra.mrb[0].mxu0 %v69
    %v105 = vpop.f32.mrb[0].mxu0
    %v106 = vadd.f32 %v53, %v105
    %v107 = vpop.f32.mrb[0].mxu0
    %v108 = vpop.f32.mrb[0].mxu0
    %v109 = vpop.f32.mrb[0].mxu0
    %110 = vdwg.mxu0
    %v111 = vlaneseq
    %v112 = vand.u32 %v111, 127
    %vm113 = vcmp.ge.s32.totalorder %v112, 64
    %vm114 = vcmp.lt.s32.totalorder %v112, 96
    %vm115 = vmand %vm113, %vm114
    %v116 = vlaneseq
    %v117 = vshrl.u32 %v116, 7
    %v118 = vld [vmem:[%s9] sm:$0x1]
    %v119 = vld [vmem:[%s10] sm:$0x1]
    %v120 = vpack.c.bf16 %v118, %v118
    %v121 = vld [vmem:[%s2] sm:$0xf]
    %v122 = vld [vmem:[%s2 + $0x4] sm:$0xf]
    %v123 = vld [vmem:[%s2 + $0x8] sm:$0xf]
    %v124 = vld [vmem:[%s2 + $0xc] sm:$0xf]
    %v129 = vunpack.c.l.b16 %v121
    %v130 = vunpack.c.l.b16 %v122
    %v131 = vunpack.c.l.b16 %v123
    %v132 = vunpack.c.l.b16 %v124
    %v133 = vpack.c.b16 %v130, %v129
    %v134 = vpack.c.b16 %v132, %v131
    %v138 = vsel %vm67, %v120, 0
    %140 = vmatprep.subr.bf16.mxu0 0
    %141 = vmatpush1.bf16.msra.mxu0 %v133
    %142 = vmatprep.subr.bf16.mxu0 0
    %143 = vmatpush1.bf16.msra.mxu0 %v134
    %144 = vmatprep.subr.bf16.mxu0 0
    %145 = vmatpush1.bf16.msra.mxu0 0
    %146 = vmatprep.subr.bf16.mxu0 0
    %147 = vmatpush1.bf16.msra.mxu0 0
    %148 = vmatprep.subr.bf16.mxu0 0
    %149 = vmatpush1.bf16.msra.mxu0 0
    %150 = vmatprep.subr.bf16.mxu0 0
    %151 = vmatpush1.bf16.msra.mxu0 0
    %152 = vmatprep.subr.bf16.mxu0 0
    %153 = vmatpush1.bf16.msra.mxu0 0
    %154 = vmatprep.subr.bf16.mxu0 0
    %155 = vmatpush1.bf16.msra.mxu0 0
    %156 = vmatprep.subr.bf16.mxu0 0
    %157 = vmatpush1.bf16.msra.mxu0 0
    %158 = vmatprep.subr.bf16.mxu0 0
    %159 = vmatpush1.bf16.msra.mxu0 0
    %160 = vmatprep.subr.bf16.mxu0 0
    %161 = vmatpush1.bf16.msra.mxu0 0
    %162 = vmatprep.subr.bf16.mxu0 0
    %163 = vmatpush1.bf16.msra.mxu0 0
    %164 = vmatprep.subr.bf16.mxu0 0
    %165 = vmatpush1.bf16.msra.mxu0 0
    %166 = vmatprep.subr.bf16.mxu0 0
    %167 = vmatpush1.bf16.msra.mxu0 0
    %168 = vmatprep.subr.bf16.mxu0 0
    %169 = vmatpush1.bf16.msra.mxu0 0
    %170 = vmatprep.subr.bf16.mxu0 0
    %171 = vmatpush1.bf16.msra.mxu0 0
    %172 = vmatprep.mubr.bf16.mxu0 0
    %173 = vmatmul.mubr.bf16.gmra.mrb[0].mxu0 %v138
    %v174 = vpop.f32.mrb[0].mxu0
    %v175 = vadd.f32 %v106, %v174
    %v176 = vpop.f32.mrb[0].mxu0
    %v177 = vpop.f32.mrb[0].mxu0
    %v178 = vpop.f32.mrb[0].mxu0
    %179 = vdwg.mxu0
    %v180 = vmul.f32 %v175, 0.5
    %v181 = vsel %vm115, %v175, %v180
    %v182 = vtanh.pop %v181
    %v183 = vmul.f32 %v182, 0.5
    %v184 = vadd.f32 %v183, 0.5
    %v185 = vsel %vm115, %v182, %v184
    %v187 = vlaneseq
    %v188 = vshrl.u32 %v187, 7
    %v189 = vsub.s32 0, %v188
    %v190 = vrot.slane %v119, %v189
    %191 = vrot.lane.b32.xlu0 %v190, 32
    %v192 = vpop.permute.xlu0 %191
    %v194 = vmul.f32 %v185, %v192
    %196 = vrot.lane.b32.xlu0 %v185, 64
    %v197 = vpop.permute.xlu0 %196
    %v199 = vmul.f32 %v185, %v197
    %201 = vrot.lane.b32.xlu0 %v199, 32
    %v202 = vpop.permute.xlu0 %201
    %v204 = vadd.f32 %v194, %v202
    %v205 = vtanh.pop %v204
    %207 = vrot.lane.b32.xlu0 %v205, 64
    %v208 = vpop.permute.xlu0 %207
    %v210 = vmul.f32 %v185, %v208
    %vm211 = vcmp.eq.s32.totalorder %v117, 0
    %v212 = vsel %vm211, 1, 0
    %vm213 = vcmp.eq.s32.totalorder %v212, 1
    %v214 = vlaneseq
    %v215 = vshrl.u32 %v214, 7
    %v216 = vsub.s32 0, %v215
    %v217 = vrot.slane %v210, %v216
    %v218 = vsel %vm213, %v217, 0.0
    %vm219 = vcmp.eq.s32.totalorder %v117, 7
    %v220 = vsel %vm219, 1, 0
    %vm221 = vcmp.eq.s32.totalorder %v220, 1
    %v222 = vsel %vm221, %v217, 0.0
    %v223 = vpack.c.bf16 %v210, %v210
    %225 = vrot.lane.b32.xlu0 %v223, 32
    %v226 = vpop.permute.xlu0 %225
    %v228 = vrot.slane %v106, 1
    %v231 = vsel %vm67, %v226, 0
    %233 = vmatprep.subr.bf16.mxu0 0
    %234 = vmatpush1.bf16.msra.mxu0 %v133
    %235 = vmatprep.subr.bf16.mxu0 0
    %236 = vmatpush1.bf16.msra.mxu0 %v134
    %237 = vmatprep.subr.bf16.mxu0 0
    %238 = vmatpush1.bf16.msra.mxu0 0
    %239 = vmatprep.subr.bf16.mxu0 0
    %240 = vmatpush1.bf16.msra.mxu0 0
    %241 = vmatprep.subr.bf16.mxu0 0
    %242 = vmatpush1.bf16.msra.mxu0 0
    %243 = vmatprep.subr.bf16.mxu0 0
    %244 = vmatpush1.bf16.msra.mxu0 0
    %245 = vmatprep.subr.bf16.mxu0 0
    %246 = vmatpush1.bf16.msra.mxu0 0
    %247 = vmatprep.subr.bf16.mxu0 0
    %248 = vmatpush1.bf16.msra.mxu0 0
    %249 = vmatprep.subr.bf16.mxu0 0
    %250 = vmatpush1.bf16.msra.mxu0 0
    %251 = vmatprep.subr.bf16.mxu0 0
    %252 = vmatpush1.bf16.msra.mxu0 0
    %253 = vmatprep.subr.bf16.mxu0 0
    %254 = vmatpush1.bf16.msra.mxu0 0
    %255 = vmatprep.subr.bf16.mxu0 0
    %256 = vmatpush1.bf16.msra.mxu0 0
    %257 = vmatprep.subr.bf16.mxu0 0
    %258 = vmatpush1.bf16.msra.mxu0 0
    %259 = vmatprep.subr.bf16.mxu0 0
    %260 = vmatpush1.bf16.msra.mxu0 0
    %261 = vmatprep.subr.bf16.mxu0 0
    %262 = vmatpush1.bf16.msra.mxu0 0
    %263 = vmatprep.subr.bf16.mxu0 0
    %264 = vmatpush1.bf16.msra.mxu0 0
    %265 = vmatprep.mubr.bf16.mxu0 0
    %266 = vmatmul.mubr.bf16.gmra.mrb[0].mxu0 %v231
    %v267 = vpop.f32.mrb[0].mxu0
    %v268 = vadd.f32 %v228, %v267
    %v269 = vpop.f32.mrb[0].mxu0
    %v270 = vpop.f32.mrb[0].mxu0
    %v271 = vpop.f32.mrb[0].mxu0
    %272 = vdwg.mxu0
    %v273 = vmul.f32 %v268, 0.5
    %v274 = vsel %vm115, %v268, %v273
    %v275 = vtanh.pop %v274
    %v276 = vmul.f32 %v275, 0.5
    %v277 = vadd.f32 %v276, 0.5
    %v278 = vsel %vm115, %v275, %v277
    %v279 = vmul.f32 %v278, %v204
    %281 = vrot.lane.b32.xlu0 %v278, 64
    %v282 = vpop.permute.xlu0 %281
    %v284 = vmul.f32 %v278, %v282
    %286 = vrot.lane.b32.xlu0 %v284, 32
    %v287 = vpop.permute.xlu0 %286
    %v289 = vadd.f32 %v279, %v287
    %v290 = vtanh.pop %v289
    %292 = vrot.lane.b32.xlu0 %v290, 64
    %v293 = vpop.permute.xlu0 %292
    %v295 = vmul.f32 %v278, %v293
    %vm296 = vcmp.eq.s32.totalorder %v117, 1
    %v297 = vsel %vm296, 1, 0
    %vm298 = vcmp.eq.s32.totalorder %v297, 1
    %v299 = vlaneseq
    %v300 = vshrl.u32 %v299, 7
    %v301 = vsub.s32 0, %v300
    %v302 = vrot.slane %v295, %v301
    %v303 = vsel %vm298, %v302, %v218
    %vm304 = vcmp.eq.s32.totalorder %v117, 6
    %v305 = vsel %vm304, 1, 0
    %vm306 = vcmp.eq.s32.totalorder %v305, 1
    %v307 = vsel %vm306, %v302, %v222
    %v308 = vpack.c.bf16 %v295, %v295
    %310 = vrot.lane.b32.xlu0 %v308, 32
    %v311 = vpop.permute.xlu0 %310
    %v312 = vrot.slane %v106, 2
    %v315 = vsel %vm67, %v311, 0
    %317 = vmatprep.subr.bf16.mxu0 0
    %318 = vmatpush1.bf16.msra.mxu0 %v133
    %319 = vmatprep.subr.bf16.mxu0 0
    %320 = vmatpush1.bf16.msra.mxu0 %v134
    %321 = vmatprep.subr.bf16.mxu0 0
    %322 = vmatpush1.bf16.msra.mxu0 0
    %323 = vmatprep.subr.bf16.mxu0 0
    %324 = vmatpush1.bf16.msra.mxu0 0
    %325 = vmatprep.subr.bf16.mxu0 0
    %326 = vmatpush1.bf16.msra.mxu0 0
    %327 = vmatprep.subr.bf16.mxu0 0
    %328 = vmatpush1.bf16.msra.mxu0 0
    %329 = vmatprep.subr.bf16.mxu0 0
    %330 = vmatpush1.bf16.msra.mxu0 0
    %331 = vmatprep.subr.bf16.mxu0 0
    %332 = vmatpush1.bf16.msra.mxu0 0
    %333 = vmatprep.subr.bf16.mxu0 0
    %334 = vmatpush1.bf16.msra.mxu0 0
    %335 = vmatprep.subr.bf16.mxu0 0
    %336 = vmatpush1.bf16.msra.mxu0 0
    %337 = vmatprep.subr.bf16.mxu0 0
    %338 = vmatpush1.bf16.msra.mxu0 0
    %339 = vmatprep.subr.bf16.mxu0 0
    %340 = vmatpush1.bf16.msra.mxu0 0
    %341 = vmatprep.subr.bf16.mxu0 0
    %342 = vmatpush1.bf16.msra.mxu0 0
    %343 = vmatprep.subr.bf16.mxu0 0
    %344 = vmatpush1.bf16.msra.mxu0 0
    %345 = vmatprep.subr.bf16.mxu0 0
    %346 = vmatpush1.bf16.msra.mxu0 0
    %347 = vmatprep.subr.bf16.mxu0 0
    %348 = vmatpush1.bf16.msra.mxu0 0
    %349 = vmatprep.mubr.bf16.mxu0 0
    %350 = vmatmul.mubr.bf16.gmra.mrb[0].mxu0 %v315
    %v351 = vpop.f32.mrb[0].mxu0
    %v352 = vadd.f32 %v312, %v351
    %v353 = vpop.f32.mrb[0].mxu0
    %v354 = vpop.f32.mrb[0].mxu0
    %v355 = vpop.f32.mrb[0].mxu0
    %356 = vdwg.mxu0
    %v357 = vmul.f32 %v352, 0.5
    %v358 = vsel %vm115, %v352, %v357
    %v359 = vtanh.pop %v358
    %v360 = vmul.f32 %v359, 0.5
    %v361 = vadd.f32 %v360, 0.5
    %v362 = vsel %vm115, %v359, %v361
    %v363 = vmul.f32 %v362, %v289
    %365 = vrot.lane.b32.xlu0 %v362, 64
    %v366 = vpop.permute.xlu0 %365
    %v368 = vmul.f32 %v362, %v366
    %370 = vrot.lane.b32.xlu0 %v368, 32
    %v371 = vpop.permute.xlu0 %370
    %v373 = vadd.f32 %v363, %v371
    %v374 = vtanh.pop %v373
    %376 = vrot.lane.b32.xlu0 %v374, 64
    %v377 = vpop.permute.xlu0 %376
    %v379 = vmul.f32 %v362, %v377
    %vm380 = vcmp.eq.s32.totalorder %v117, 2
    %v381 = vsel %vm380, 1, 0
    %vm382 = vcmp.eq.s32.totalorder %v381, 1
    %v383 = vlaneseq
    %v384 = vshrl.u32 %v383, 7
    %v385 = vsub.s32 0, %v384
    %v386 = vrot.slane %v379, %v385
    %v387 = vsel %vm382, %v386, %v303
    %vm388 = vcmp.eq.s32.totalorder %v117, 5
    %v389 = vsel %vm388, 1, 0
    %vm390 = vcmp.eq.s32.totalorder %v389, 1
    %v391 = vsel %vm390, %v386, %v307
    %v392 = vpack.c.bf16 %v379, %v379
    %394 = vrot.lane.b32.xlu0 %v392, 32
    %v395 = vpop.permute.xlu0 %394
    %v396 = vrot.slane %v106, 3
    %v399 = vsel %vm67, %v395, 0
    %401 = vmatprep.subr.bf16.mxu0 0
    %402 = vmatpush1.bf16.msra.mxu0 %v133
    %403 = vmatprep.subr.bf16.mxu0 0
    %404 = vmatpush1.bf16.msra.mxu0 %v134
    %405 = vmatprep.subr.bf16.mxu0 0
    %406 = vmatpush1.bf16.msra.mxu0 0
    %407 = vmatprep.subr.bf16.mxu0 0
    %408 = vmatpush1.bf16.msra.mxu0 0
    %409 = vmatprep.subr.bf16.mxu0 0
    %410 = vmatpush1.bf16.msra.mxu0 0
    %411 = vmatprep.subr.bf16.mxu0 0
    %412 = vmatpush1.bf16.msra.mxu0 0
    %413 = vmatprep.subr.bf16.mxu0 0
    %414 = vmatpush1.bf16.msra.mxu0 0
    %415 = vmatprep.subr.bf16.mxu0 0
    %416 = vmatpush1.bf16.msra.mxu0 0
    %417 = vmatprep.subr.bf16.mxu0 0
    %418 = vmatpush1.bf16.msra.mxu0 0
    %419 = vmatprep.subr.bf16.mxu0 0
    %420 = vmatpush1.bf16.msra.mxu0 0
    %421 = vmatprep.subr.bf16.mxu0 0
    %422 = vmatpush1.bf16.msra.mxu0 0
    %423 = vmatprep.subr.bf16.mxu0 0
    %424 = vmatpush1.bf16.msra.mxu0 0
    %425 = vmatprep.subr.bf16.mxu0 0
    %426 = vmatpush1.bf16.msra.mxu0 0
    %427 = vmatprep.subr.bf16.mxu0 0
    %428 = vmatpush1.bf16.msra.mxu0 0
    %429 = vmatprep.subr.bf16.mxu0 0
    %430 = vmatpush1.bf16.msra.mxu0 0
    %431 = vmatprep.subr.bf16.mxu0 0
    %432 = vmatpush1.bf16.msra.mxu0 0
    %433 = vmatprep.mubr.bf16.mxu0 0
    %434 = vmatmul.mubr.bf16.gmra.mrb[0].mxu0 %v399
    %v435 = vpop.f32.mrb[0].mxu0
    %v436 = vadd.f32 %v396, %v435
    %v437 = vpop.f32.mrb[0].mxu0
    %v438 = vpop.f32.mrb[0].mxu0
    %v439 = vpop.f32.mrb[0].mxu0
    %440 = vdwg.mxu0
    %v441 = vmul.f32 %v436, 0.5
    %v442 = vsel %vm115, %v436, %v441
    %v443 = vtanh.pop %v442
    %v444 = vmul.f32 %v443, 0.5
    %v445 = vadd.f32 %v444, 0.5
    %v446 = vsel %vm115, %v443, %v445
    %v447 = vmul.f32 %v446, %v373
    %449 = vrot.lane.b32.xlu0 %v446, 64
    %v450 = vpop.permute.xlu0 %449
    %v452 = vmul.f32 %v446, %v450
    %454 = vrot.lane.b32.xlu0 %v452, 32
    %v455 = vpop.permute.xlu0 %454
    %v457 = vadd.f32 %v447, %v455
    %v458 = vtanh.pop %v457
    %460 = vrot.lane.b32.xlu0 %v458, 64
    %v461 = vpop.permute.xlu0 %460
    %v463 = vmul.f32 %v446, %v461
    %vm464 = vcmp.eq.s32.totalorder %v117, 3
    %v465 = vsel %vm464, 1, 0
    %vm466 = vcmp.eq.s32.totalorder %v465, 1
    %v467 = vlaneseq
    %v468 = vshrl.u32 %v467, 7
    %v469 = vsub.s32 0, %v468
    %v470 = vrot.slane %v463, %v469
    %v471 = vsel %vm466, %v470, %v387
    %vm472 = vcmp.eq.s32.totalorder %v117, 4
    %v473 = vsel %vm472, 1, 0
    %vm474 = vcmp.eq.s32.totalorder %v473, 1
    %v475 = vsel %vm474, %v470, %v391
    %v476 = vpack.c.bf16 %v463, %v463
    %478 = vrot.lane.b32.xlu0 %v476, 32
    %v479 = vpop.permute.xlu0 %478
    %v480 = vrot.slane %v106, 4
    %v483 = vsel %vm67, %v479, 0
    %485 = vmatprep.subr.bf16.mxu0 0
    %486 = vmatpush1.bf16.msra.mxu0 %v133
    %487 = vmatprep.subr.bf16.mxu0 0
    %488 = vmatpush1.bf16.msra.mxu0 %v134
    %489 = vmatprep.subr.bf16.mxu0 0
    %490 = vmatpush1.bf16.msra.mxu0 0
    %491 = vmatprep.subr.bf16.mxu0 0
    %492 = vmatpush1.bf16.msra.mxu0 0
    %493 = vmatprep.subr.bf16.mxu0 0
    %494 = vmatpush1.bf16.msra.mxu0 0
    %495 = vmatprep.subr.bf16.mxu0 0
    %496 = vmatpush1.bf16.msra.mxu0 0
    %497 = vmatprep.subr.bf16.mxu0 0
    %498 = vmatpush1.bf16.msra.mxu0 0
    %499 = vmatprep.subr.bf16.mxu0 0
    %500 = vmatpush1.bf16.msra.mxu0 0
    %501 = vmatprep.subr.bf16.mxu0 0
    %502 = vmatpush1.bf16.msra.mxu0 0
    %503 = vmatprep.subr.bf16.mxu0 0
    %504 = vmatpush1.bf16.msra.mxu0 0
    %505 = vmatprep.subr.bf16.mxu0 0
    %506 = vmatpush1.bf16.msra.mxu0 0
    %507 = vmatprep.subr.bf16.mxu0 0
    %508 = vmatpush1.bf16.msra.mxu0 0
    %509 = vmatprep.subr.bf16.mxu0 0
    %510 = vmatpush1.bf16.msra.mxu0 0
    %511 = vmatprep.subr.bf16.mxu0 0
    %512 = vmatpush1.bf16.msra.mxu0 0
    %513 = vmatprep.subr.bf16.mxu0 0
    %514 = vmatpush1.bf16.msra.mxu0 0
    %515 = vmatprep.subr.bf16.mxu0 0
    %516 = vmatpush1.bf16.msra.mxu0 0
    %517 = vmatprep.mubr.bf16.mxu0 0
    %518 = vmatmul.mubr.bf16.gmra.mrb[0].mxu0 %v483
    %v519 = vpop.f32.mrb[0].mxu0
    %v520 = vadd.f32 %v480, %v519
    %v521 = vpop.f32.mrb[0].mxu0
    %v522 = vpop.f32.mrb[0].mxu0
    %v523 = vpop.f32.mrb[0].mxu0
    %524 = vdwg.mxu0
    %v525 = vmul.f32 %v520, 0.5
    %v526 = vsel %vm115, %v520, %v525
    %v527 = vtanh.pop %v526
    %v528 = vmul.f32 %v527, 0.5
    %v529 = vadd.f32 %v528, 0.5
    %v530 = vsel %vm115, %v527, %v529
    %v531 = vmul.f32 %v530, %v457
    %533 = vrot.lane.b32.xlu0 %v530, 64
    %v534 = vpop.permute.xlu0 %533
    %v536 = vmul.f32 %v530, %v534
    %538 = vrot.lane.b32.xlu0 %v536, 32
    %v539 = vpop.permute.xlu0 %538
    %v541 = vadd.f32 %v531, %v539
    %v542 = vtanh.pop %v541
    %544 = vrot.lane.b32.xlu0 %v542, 64
    %v545 = vpop.permute.xlu0 %544
    %v547 = vmul.f32 %v530, %v545
    %v548 = vlaneseq
    %v549 = vshrl.u32 %v548, 7
    %v550 = vsub.s32 0, %v549
    %v551 = vrot.slane %v547, %v550
    %v552 = vsel %vm474, %v551, %v471
    %v553 = vsel %vm466, %v551, %v475
    %v554 = vpack.c.bf16 %v547, %v547
    %556 = vrot.lane.b32.xlu0 %v554, 32
    %v557 = vpop.permute.xlu0 %556
    %v558 = vrot.slane %v106, 5
    %v561 = vsel %vm67, %v557, 0
    %563 = vmatprep.subr.bf16.mxu0 0
    %564 = vmatpush1.bf16.msra.mxu0 %v133
    %565 = vmatprep.subr.bf16.mxu0 0
    %566 = vmatpush1.bf16.msra.mxu0 %v134
    %567 = vmatprep.subr.bf16.mxu0 0
    %568 = vmatpush1.bf16.msra.mxu0 0
    %569 = vmatprep.subr.bf16.mxu0 0
    %570 = vmatpush1.bf16.msra.mxu0 0
    %571 = vmatprep.subr.bf16.mxu0 0
    %572 = vmatpush1.bf16.msra.mxu0 0
    %573 = vmatprep.subr.bf16.mxu0 0
    %574 = vmatpush1.bf16.msra.mxu0 0
    %575 = vmatprep.subr.bf16.mxu0 0
    %576 = vmatpush1.bf16.msra.mxu0 0
    %577 = vmatprep.subr.bf16.mxu0 0
    %578 = vmatpush1.bf16.msra.mxu0 0
    %579 = vmatprep.subr.bf16.mxu0 0
    %580 = vmatpush1.bf16.msra.mxu0 0
    %581 = vmatprep.subr.bf16.mxu0 0
    %582 = vmatpush1.bf16.msra.mxu0 0
    %583 = vmatprep.subr.bf16.mxu0 0
    %584 = vmatpush1.bf16.msra.mxu0 0
    %585 = vmatprep.subr.bf16.mxu0 0
    %586 = vmatpush1.bf16.msra.mxu0 0
    %587 = vmatprep.subr.bf16.mxu0 0
    %588 = vmatpush1.bf16.msra.mxu0 0
    %589 = vmatprep.subr.bf16.mxu0 0
    %590 = vmatpush1.bf16.msra.mxu0 0
    %591 = vmatprep.subr.bf16.mxu0 0
    %592 = vmatpush1.bf16.msra.mxu0 0
    %593 = vmatprep.subr.bf16.mxu0 0
    %594 = vmatpush1.bf16.msra.mxu0 0
    %595 = vmatprep.mubr.bf16.mxu0 0
    %596 = vmatmul.mubr.bf16.gmra.mrb[0].mxu0 %v561
    %v597 = vpop.f32.mrb[0].mxu0
    %v598 = vadd.f32 %v558, %v597
    %v599 = vpop.f32.mrb[0].mxu0
    %v600 = vpop.f32.mrb[0].mxu0
    %v601 = vpop.f32.mrb[0].mxu0
    %602 = vdwg.mxu0
    %v603 = vmul.f32 %v598, 0.5
    %v604 = vsel %vm115, %v598, %v603
    %v605 = vtanh.pop %v604
    %v606 = vmul.f32 %v605, 0.5
    %v607 = vadd.f32 %v606, 0.5
    %v608 = vsel %vm115, %v605, %v607
    %v609 = vmul.f32 %v608, %v541
    %611 = vrot.lane.b32.xlu0 %v608, 64
    %v612 = vpop.permute.xlu0 %611
    %v614 = vmul.f32 %v608, %v612
    %616 = vrot.lane.b32.xlu0 %v614, 32
    %v617 = vpop.permute.xlu0 %616
    %v619 = vadd.f32 %v609, %v617
    %v620 = vtanh.pop %v619
    %622 = vrot.lane.b32.xlu0 %v620, 64
    %v623 = vpop.permute.xlu0 %622
    %v625 = vmul.f32 %v608, %v623
    %v626 = vlaneseq
    %v627 = vshrl.u32 %v626, 7
    %v628 = vsub.s32 0, %v627
    %v629 = vrot.slane %v625, %v628
    %v630 = vsel %vm390, %v629, %v552
    %v631 = vsel %vm382, %v629, %v553
    %v632 = vpack.c.bf16 %v625, %v625
    %634 = vrot.lane.b32.xlu0 %v632, 32
    %v635 = vpop.permute.xlu0 %634
    %v636 = vrot.slane %v106, 6
    %v639 = vsel %vm67, %v635, 0
    %641 = vmatprep.subr.bf16.mxu0 0
    %642 = vmatpush1.bf16.msra.mxu0 %v133
    %643 = vmatprep.subr.bf16.mxu0 0
    %644 = vmatpush1.bf16.msra.mxu0 %v134
    %645 = vmatprep.subr.bf16.mxu0 0
    %646 = vmatpush1.bf16.msra.mxu0 0
    %647 = vmatprep.subr.bf16.mxu0 0
    %648 = vmatpush1.bf16.msra.mxu0 0
    %649 = vmatprep.subr.bf16.mxu0 0
    %650 = vmatpush1.bf16.msra.mxu0 0
    %651 = vmatprep.subr.bf16.mxu0 0
    %652 = vmatpush1.bf16.msra.mxu0 0
    %653 = vmatprep.subr.bf16.mxu0 0
    %654 = vmatpush1.bf16.msra.mxu0 0
    %655 = vmatprep.subr.bf16.mxu0 0
    %656 = vmatpush1.bf16.msra.mxu0 0
    %657 = vmatprep.subr.bf16.mxu0 0
    %658 = vmatpush1.bf16.msra.mxu0 0
    %659 = vmatprep.subr.bf16.mxu0 0
    %660 = vmatpush1.bf16.msra.mxu0 0
    %661 = vmatprep.subr.bf16.mxu0 0
    %662 = vmatpush1.bf16.msra.mxu0 0
    %663 = vmatprep.subr.bf16.mxu0 0
    %664 = vmatpush1.bf16.msra.mxu0 0
    %665 = vmatprep.subr.bf16.mxu0 0
    %666 = vmatpush1.bf16.msra.mxu0 0
    %667 = vmatprep.subr.bf16.mxu0 0
    %668 = vmatpush1.bf16.msra.mxu0 0
    %669 = vmatprep.subr.bf16.mxu0 0
    %670 = vmatpush1.bf16.msra.mxu0 0
    %671 = vmatprep.subr.bf16.mxu0 0
    %672 = vmatpush1.bf16.msra.mxu0 0
    %673 = vmatprep.mubr.bf16.mxu0 0
    %674 = vmatmul.mubr.bf16.gmra.mrb[0].mxu0 %v639
    %v675 = vpop.f32.mrb[0].mxu0
    %v676 = vadd.f32 %v636, %v675
    %v677 = vpop.f32.mrb[0].mxu0
    %v678 = vpop.f32.mrb[0].mxu0
    %v679 = vpop.f32.mrb[0].mxu0
    %680 = vdwg.mxu0
    %v681 = vmul.f32 %v676, 0.5
    %v682 = vsel %vm115, %v676, %v681
    %v683 = vtanh.pop %v682
    %v684 = vmul.f32 %v683, 0.5
    %v685 = vadd.f32 %v684, 0.5
    %v686 = vsel %vm115, %v683, %v685
    %v687 = vmul.f32 %v686, %v619
    %689 = vrot.lane.b32.xlu0 %v686, 64
    %v690 = vpop.permute.xlu0 %689
    %v692 = vmul.f32 %v686, %v690
    %694 = vrot.lane.b32.xlu0 %v692, 32
    %v695 = vpop.permute.xlu0 %694
    %v697 = vadd.f32 %v687, %v695
    %v698 = vtanh.pop %v697
    %700 = vrot.lane.b32.xlu0 %v698, 64
    %v701 = vpop.permute.xlu0 %700
    %v703 = vmul.f32 %v686, %v701
    %v704 = vlaneseq
    %v705 = vshrl.u32 %v704, 7
    %v706 = vsub.s32 0, %v705
    %v707 = vrot.slane %v703, %v706
    %v708 = vsel %vm306, %v707, %v630
    %v709 = vsel %vm298, %v707, %v631
    %v710 = vpack.c.bf16 %v703, %v703
    %712 = vrot.lane.b32.xlu0 %v710, 32
    %v713 = vpop.permute.xlu0 %712
    %v714 = vrot.slane %v106, 7
    %v717 = vsel %vm67, %v713, 0
    %719 = vmatprep.subr.bf16.mxu0 0
    %720 = vmatpush1.bf16.msra.mxu0 %v133
    %721 = vmatprep.subr.bf16.mxu0 0
    %722 = vmatpush1.bf16.msra.mxu0 %v134
    %723 = vmatprep.subr.bf16.mxu0 0
    %724 = vmatpush1.bf16.msra.mxu0 0
    %725 = vmatprep.subr.bf16.mxu0 0
    %726 = vmatpush1.bf16.msra.mxu0 0
    %727 = vmatprep.subr.bf16.mxu0 0
    %728 = vmatpush1.bf16.msra.mxu0 0
    %729 = vmatprep.subr.bf16.mxu0 0
    %730 = vmatpush1.bf16.msra.mxu0 0
    %731 = vmatprep.subr.bf16.mxu0 0
    %732 = vmatpush1.bf16.msra.mxu0 0
    %733 = vmatprep.subr.bf16.mxu0 0
    %734 = vmatpush1.bf16.msra.mxu0 0
    %735 = vmatprep.subr.bf16.mxu0 0
    %736 = vmatpush1.bf16.msra.mxu0 0
    %737 = vmatprep.subr.bf16.mxu0 0
    %738 = vmatpush1.bf16.msra.mxu0 0
    %739 = vmatprep.subr.bf16.mxu0 0
    %740 = vmatpush1.bf16.msra.mxu0 0
    %741 = vmatprep.subr.bf16.mxu0 0
    %742 = vmatpush1.bf16.msra.mxu0 0
    %743 = vmatprep.subr.bf16.mxu0 0
    %744 = vmatpush1.bf16.msra.mxu0 0
    %745 = vmatprep.subr.bf16.mxu0 0
    %746 = vmatpush1.bf16.msra.mxu0 0
    %747 = vmatprep.subr.bf16.mxu0 0
    %748 = vmatpush1.bf16.msra.mxu0 0
    %749 = vmatprep.subr.bf16.mxu0 0
    %750 = vmatpush1.bf16.msra.mxu0 0
    %751 = vmatprep.mubr.bf16.mxu0 0
    %752 = vmatmul.mubr.bf16.gmra.mrb[0].mxu0 %v717
    %v753 = vpop.f32.mrb[0].mxu0
    %v754 = vadd.f32 %v714, %v753
    %v755 = vpop.f32.mrb[0].mxu0
    %v756 = vpop.f32.mrb[0].mxu0
    %v757 = vpop.f32.mrb[0].mxu0
    %758 = vdwg.mxu0
    %v759 = vmul.f32 %v754, 0.5
    %v760 = vsel %vm115, %v754, %v759
    %v761 = vtanh.pop %v760
    %v762 = vmul.f32 %v761, 0.5
    %v763 = vadd.f32 %v762, 0.5
    %v764 = vsel %vm115, %v761, %v763
    %v765 = vmul.f32 %v764, %v697
    %767 = vrot.lane.b32.xlu0 %v764, 64
    %v768 = vpop.permute.xlu0 %767
    %v770 = vmul.f32 %v764, %v768
    %772 = vrot.lane.b32.xlu0 %v770, 32
    %v773 = vpop.permute.xlu0 %772
    %v775 = vadd.f32 %v765, %v773
    %v776 = vtanh.pop %v775
    %778 = vrot.lane.b32.xlu0 %v776, 64
    %v779 = vpop.permute.xlu0 %778
    %v781 = vmul.f32 %v764, %v779
    %v782 = vlaneseq
    %v783 = vshrl.u32 %v782, 7
    %v784 = vsub.s32 0, %v783
    %v785 = vrot.slane %v781, %v784
    %v786 = vsel %vm221, %v785, %v708
    %v787 = vsel %vm213, %v785, %v709
    %v788 = vpack.c.bf16 %v786, %v786
    %v789 = vld [vmem:[%s4] sm:$0xf]
    %v790 = vld [vmem:[%s4 + $0x4] sm:$0xf]
    %v791 = vpack.c.bf16 %v787, %v787
    %v792 = vld [vmem:[%s4 + $0x8] sm:$0xf]
    %v793 = vld [vmem:[%s4 + $0xc] sm:$0xf]
    %795 = vrot.lane.b32.xlu0 %v791, 16
    %v796 = vpop.permute.xlu0 %795
    %v799 = vunpack.c.l.b16 %v792
    %v800 = vunpack.c.l.b16 %v793
    %v801 = vpack.c.b16 %v800, %v799
    %vm803 = vcmask 130048
    %v805 = vsel %vm803, %v796, 0
    %807 = vmatprep.subr.bf16.mxu0 0
    %808 = vmatpush1.bf16.msra.mxu0 %v801
    %809 = vmatprep.subr.bf16.mxu0 0
    %810 = vmatpush1.bf16.msra.mxu0 0
    %811 = vmatprep.subr.bf16.mxu0 0
    %812 = vmatpush1.bf16.msra.mxu0 0
    %813 = vmatprep.subr.bf16.mxu0 0
    %814 = vmatpush1.bf16.msra.mxu0 0
    %815 = vmatprep.subr.bf16.mxu0 0
    %816 = vmatpush1.bf16.msra.mxu0 0
    %817 = vmatprep.subr.bf16.mxu0 0
    %818 = vmatpush1.bf16.msra.mxu0 0
    %819 = vmatprep.subr.bf16.mxu0 0
    %820 = vmatpush1.bf16.msra.mxu0 0
    %821 = vmatprep.subr.bf16.mxu0 0
    %822 = vmatpush1.bf16.msra.mxu0 0
    %823 = vmatprep.subr.bf16.mxu0 0
    %824 = vmatpush1.bf16.msra.mxu0 0
    %825 = vmatprep.subr.bf16.mxu0 0
    %826 = vmatpush1.bf16.msra.mxu0 0
    %827 = vmatprep.subr.bf16.mxu0 0
    %828 = vmatpush1.bf16.msra.mxu0 0
    %829 = vmatprep.subr.bf16.mxu0 0
    %830 = vmatpush1.bf16.msra.mxu0 0
    %831 = vmatprep.subr.bf16.mxu0 0
    %832 = vmatpush1.bf16.msra.mxu0 0
    %833 = vmatprep.subr.bf16.mxu0 0
    %834 = vmatpush1.bf16.msra.mxu0 0
    %835 = vmatprep.subr.bf16.mxu0 0
    %836 = vmatpush1.bf16.msra.mxu0 0
    %837 = vmatprep.subr.bf16.mxu0 0
    %838 = vmatpush1.bf16.msra.mxu0 0
    %839 = vmatprep.mubr.bf16.mxu0 0
    %840 = vmatmul.mubr.bf16.gmra.mrb[0].mxu0 %v805
    %v841 = vpop.f32.mrb[0].mxu0
    %v842 = vadd.f32 0.0, %v841
    %v843 = vpop.f32.mrb[0].mxu0
    %v844 = vpop.f32.mrb[0].mxu0
    %v845 = vpop.f32.mrb[0].mxu0
    %846 = vdwg.mxu0
    %848 = vrot.lane.b32.xlu0 %v788, 32
    %v849 = vpop.permute.xlu0 %848
    %v852 = vunpack.c.l.b16 %v789
    %v853 = vunpack.c.l.b16 %v790
    %v854 = vpack.c.b16 %v853, %v852
    %v857 = vsel %vm803, %v849, 0
    %859 = vmatprep.subr.bf16.mxu0 0
    %860 = vmatpush1.bf16.msra.mxu0 %v854
    %861 = vmatprep.subr.bf16.mxu0 0
    %862 = vmatpush1.bf16.msra.mxu0 0
    %863 = vmatprep.subr.bf16.mxu0 0
    %864 = vmatpush1.bf16.msra.mxu0 0
    %865 = vmatprep.subr.bf16.mxu0 0
    %866 = vmatpush1.bf16.msra.mxu0 0
    %867 = vmatprep.subr.bf16.mxu0 0
    %868 = vmatpush1.bf16.msra.mxu0 0
    %869 = vmatprep.subr.bf16.mxu0 0
    %870 = vmatpush1.bf16.msra.mxu0 0
    %871 = vmatprep.subr.bf16.mxu0 0
    %872 = vmatpush1.bf16.msra.mxu0 0
    %873 = vmatprep.subr.bf16.mxu0 0
    %874 = vmatpush1.bf16.msra.mxu0 0
    %875 = vmatprep.subr.bf16.mxu0 0
    %876 = vmatpush1.bf16.msra.mxu0 0
    %877 = vmatprep.subr.bf16.mxu0 0
    %878 = vmatpush1.bf16.msra.mxu0 0
    %879 = vmatprep.subr.bf16.mxu0 0
    %880 = vmatpush1.bf16.msra.mxu0 0
    %881 = vmatprep.subr.bf16.mxu0 0
    %882 = vmatpush1.bf16.msra.mxu0 0
    %883 = vmatprep.subr.bf16.mxu0 0
    %884 = vmatpush1.bf16.msra.mxu0 0
    %885 = vmatprep.subr.bf16.mxu0 0
    %886 = vmatpush1.bf16.msra.mxu0 0
    %887 = vmatprep.subr.bf16.mxu0 0
    %888 = vmatpush1.bf16.msra.mxu0 0
    %889 = vmatprep.subr.bf16.mxu0 0
    %890 = vmatpush1.bf16.msra.mxu0 0
    %891 = vmatprep.mubr.bf16.mxu0 0
    %892 = vmatmul.mubr.bf16.gmra.mrb[0].mxu0 %v857
    %v893 = vpop.f32.mrb[0].mxu0
    %v894 = vadd.f32 %v842, %v893
    %v895 = vpop.f32.mrb[0].mxu0
    %v896 = vpop.f32.mrb[0].mxu0
    %v897 = vpop.f32.mrb[0].mxu0
    %898 = vdwg.mxu0
    %v899 = vld [vmem:[%s5] sm:$0x1]
    %v901 = vlaneseq
    %v902 = vshrl.u32 %v901, 7
    %v903 = vsub.s32 0, %v902
    %v904 = vrot.slane %v899, %v903
    %v906 = vadd.f32 %v894, %v904
    %v907 = vld [vmem:[%s6] sm:$0x3f]
    %v908 = vld [vmem:[%s7] sm:$0x3f]
    %vm909 = vcmp.eq.s32.totalorder %v117, %v112
    %v910 = vlaneseq
    %v911 = vshrl.u32 %v910, 7
    %v912 = vsub.s32 1, %v911
    %v913 = vrot.slane %v906, %v912
    %v914 = vsel %vm909, %v913, 0.0
    %vm915 = vcmask 46080
    %v916 = vsel %vm915, %v914, 0.0
    %917 = vadd.xlane.f32.xlu0 %v916
    %v918 = vpop.xlane.xlu0 %917
    %v919 = vlaneseq
    %v920 = vshrl.u32 %v919, 7
    %v921 = vsub.s32 3, %v920
    %v922 = vrot.slane %v906, %v921
    %v923 = vsel %vm909, %v922, 0.0
    %v924 = vsel %vm915, %v923, 0.0
    %925 = vadd.xlane.f32.xlu0 %v924
    %v926 = vpop.xlane.xlu0 %925
    %v927 = vlaneseq
    %v928 = vshrl.u32 %v927, 7
    %v929 = vsub.s32 5, %v928
    %v930 = vrot.slane %v906, %v929
    %v931 = vsel %vm909, %v930, 0.0
    %v932 = vsel %vm915, %v931, 0.0
    %933 = vadd.xlane.f32.xlu0 %v932
    %v934 = vpop.xlane.xlu0 %933
    %v935 = vlaneseq
    %v936 = vshrl.u32 %v935, 7
    %v937 = vsub.s32 7, %v936
    %v938 = vrot.slane %v906, %v937
    %v939 = vsel %vm909, %v938, 0.0
    %v940 = vsel %vm915, %v939, 0.0
    %941 = vadd.xlane.f32.xlu0 %v940
    %v942 = vpop.xlane.xlu0 %941
    %v943 = vsel %vm388, 0.0, -10000.0
    %v944 = vadd.f32 %v943, %v908
    %v945 = vsel %vm915, %v944, -inf
    %v946 = vrot.slane %v945, 4
    %v947 = vmax.f32 %v945, %v946
    %v948 = vrot.slane %v947, 2
    %v949 = vmax.f32 %v947, %v948
    %v950 = vrot.slane %v949, 1
    %v951 = vmax.f32 %v949, %v950
    %v952 = vadd.f32 %v951, %v906
    %v953 = vlaneseq
    %v954 = vshrl.u32 %v953, 7
    %v955 = vsub.s32 0, %v954
    %v956 = vrot.slane %v952, %v955
    %v957 = vadd.f32 %v956, %v907
    %v958 = vsel %vm915, %v957, -inf
    %959 = vmax.xlane.f32.xlu0 %v958
    %v960 = vpop.xlane.xlu0 %959
    %vm961 = vcmp.eq.f32.partialorder %v957, %v960
    %v962 = vsel %vm961, %v112, 6
    %v963 = vsel %vm915, %v962, 2147483647
    %v964 = vand.u32 %v963, 65535
    %v965 = vshra.s32 %v963, 16
    %v966 = vcvt.s32.f32 %v964
    %v967 = vcvt.s32.f32 %v965
    %968 = vmin.xlane.f32.xlu0 %v967
    %v969 = vpop.xlane.xlu0 %968
    %vm970 = vcmp.eq.f32.partialorder %v967, %v969
    %v971 = vsel %vm970, %v966, inf
    %972 = vmin.xlane.f32.xlu0 %v971
    %v973 = vpop.xlane.xlu0 %972
    %v974 = vcvt.f32.s32 %v973
    %v975 = vcvt.f32.s32 %v969
    %v976 = vshll.u32 %v975, 16
    %v977 = vadd.s32 %v976, %v974
    %v978 = vadd.f32 %v960, %v918
    %v979 = vadd.f32 %v978, %v908
    %v980 = vsel %vm915, %v979, -inf
    %v981 = vrot.slane %v980, 4
    %v982 = vmax.f32 %v980, %v981
    %v983 = vrot.slane %v982, 2
    %v984 = vmax.f32 %v982, %v983
    %v985 = vrot.slane %v984, 1
    %v986 = vmax.f32 %v984, %v985
    %vm987 = vcmp.eq.f32.partialorder %v979, %v986
    %v988 = vsel %vm987, %v117, 6
    %v989 = vsel %vm915, %v988, 2147483647
    %v990 = vrot.slane %v989, 4
    %vm991 = vcmp.lt.s32.totalorder %v989, %v990
    %v992 = vsel %vm991, %v989, %v990
    %v993 = vrot.slane %v992, 2
    %vm994 = vcmp.lt.s32.totalorder %v992, %v993
    %v995 = vsel %vm994, %v992, %v993
    %v996 = vrot.slane %v995, 1
    %vm997 = vcmp.lt.s32.totalorder %v995, %v996
    %v998 = vsel %vm997, %v995, %v996
    %v999 = vadd.f32 %v986, %v906
    %v1000 = vlaneseq
    %v1001 = vshrl.u32 %v1000, 7
    %v1002 = vsub.s32 2, %v1001
    %v1003 = vrot.slane %v999, %v1002
    %v1004 = vadd.f32 %v1003, %v907
    %v1005 = vsel %vm915, %v1004, -inf
    %1006 = vmax.xlane.f32.xlu0 %v1005
    %v1007 = vpop.xlane.xlu0 %1006
    %vm1008 = vcmp.eq.f32.partialorder %v1004, %v1007
    %v1009 = vsel %vm1008, %v112, 6
    %v1010 = vsel %vm915, %v1009, 2147483647
    %v1011 = vand.u32 %v1010, 65535
    %v1012 = vshra.s32 %v1010, 16
    %v1013 = vcvt.s32.f32 %v1011
    %v1014 = vcvt.s32.f32 %v1012
    %1015 = vmin.xlane.f32.xlu0 %v1014
    %v1016 = vpop.xlane.xlu0 %1015
    %vm1017 = vcmp.eq.f32.partialorder %v1014, %v1016
    %v1018 = vsel %vm1017, %v1013, inf
    %1019 = vmin.xlane.f32.xlu0 %v1018
    %v1020 = vpop.xlane.xlu0 %1019
    %v1021 = vcvt.f32.s32 %v1020
    %v1022 = vcvt.f32.s32 %v1016
    %v1023 = vshll.u32 %v1022, 16
    %v1024 = vadd.s32 %v1023, %v1021
    %v1025 = vadd.f32 %v1007, %v926
    %v1026 = vadd.f32 %v1025, %v908
    %v1027 = vsel %vm915, %v1026, -inf
    %v1028 = vrot.slane %v1027, 4
    %v1029 = vmax.f32 %v1027, %v1028
    %v1030 = vrot.slane %v1029, 2
    %v1031 = vmax.f32 %v1029, %v1030
    %v1032 = vrot.slane %v1031, 1
    %v1033 = vmax.f32 %v1031, %v1032
    %vm1034 = vcmp.eq.f32.partialorder %v1026, %v1033
    %v1035 = vsel %vm1034, %v117, 6
    %v1036 = vsel %vm915, %v1035, 2147483647
    %v1037 = vrot.slane %v1036, 4
    %vm1038 = vcmp.lt.s32.totalorder %v1036, %v1037
    %v1039 = vsel %vm1038, %v1036, %v1037
    %v1040 = vrot.slane %v1039, 2
    %vm1041 = vcmp.lt.s32.totalorder %v1039, %v1040
    %v1042 = vsel %vm1041, %v1039, %v1040
    %v1043 = vrot.slane %v1042, 1
    %vm1044 = vcmp.lt.s32.totalorder %v1042, %v1043
    %v1045 = vsel %vm1044, %v1042, %v1043
    %v1046 = vadd.f32 %v1033, %v906
    %v1047 = vlaneseq
    %v1048 = vshrl.u32 %v1047, 7
    %v1049 = vsub.s32 4, %v1048
    %v1050 = vrot.slane %v1046, %v1049
    %v1051 = vadd.f32 %v1050, %v907
    %v1052 = vsel %vm915, %v1051, -inf
    %1053 = vmax.xlane.f32.xlu0 %v1052
    %v1054 = vpop.xlane.xlu0 %1053
    %vm1055 = vcmp.eq.f32.partialorder %v1051, %v1054
    %v1056 = vsel %vm1055, %v112, 6
    %v1057 = vsel %vm915, %v1056, 2147483647
    %v1058 = vand.u32 %v1057, 65535
    %v1059 = vshra.s32 %v1057, 16
    %v1060 = vcvt.s32.f32 %v1058
    %v1061 = vcvt.s32.f32 %v1059
    %1062 = vmin.xlane.f32.xlu0 %v1061
    %v1063 = vpop.xlane.xlu0 %1062
    %vm1064 = vcmp.eq.f32.partialorder %v1061, %v1063
    %v1065 = vsel %vm1064, %v1060, inf
    %1066 = vmin.xlane.f32.xlu0 %v1065
    %v1067 = vpop.xlane.xlu0 %1066
    %v1068 = vcvt.f32.s32 %v1067
    %v1069 = vcvt.f32.s32 %v1063
    %v1070 = vshll.u32 %v1069, 16
    %v1071 = vadd.s32 %v1070, %v1068
    %v1072 = vadd.f32 %v1054, %v934
    %v1073 = vadd.f32 %v1072, %v908
    %v1074 = vsel %vm915, %v1073, -inf
    %v1075 = vrot.slane %v1074, 4
    %v1076 = vmax.f32 %v1074, %v1075
    %v1077 = vrot.slane %v1076, 2
    %v1078 = vmax.f32 %v1076, %v1077
    %v1079 = vrot.slane %v1078, 1
    %v1080 = vmax.f32 %v1078, %v1079
    %vm1081 = vcmp.eq.f32.partialorder %v1073, %v1080
    %v1082 = vsel %vm1081, %v117, 6
    %v1083 = vsel %vm915, %v1082, 2147483647
    %v1084 = vrot.slane %v1083, 4
    %vm1085 = vcmp.lt.s32.totalorder %v1083, %v1084
    %v1086 = vsel %vm1085, %v1083, %v1084
    %v1087 = vrot.slane %v1086, 2
    %vm1088 = vcmp.lt.s32.totalorder %v1086, %v1087
    %v1089 = vsel %vm1088, %v1086, %v1087
    %v1090 = vrot.slane %v1089, 1
    %vm1091 = vcmp.lt.s32.totalorder %v1089, %v1090
    %v1092 = vsel %vm1091, %v1089, %v1090
    %v1093 = vadd.f32 %v1080, %v906
    %v1094 = vlaneseq
    %v1095 = vshrl.u32 %v1094, 7
    %v1096 = vsub.s32 6, %v1095
    %v1097 = vrot.slane %v1093, %v1096
    %v1098 = vadd.f32 %v1097, %v907
    %v1099 = vsel %vm915, %v1098, -inf
    %1100 = vmax.xlane.f32.xlu0 %v1099
    %v1101 = vpop.xlane.xlu0 %1100
    %vm1102 = vcmp.eq.f32.partialorder %v1098, %v1101
    %v1103 = vsel %vm1102, %v112, 6
    %v1104 = vsel %vm915, %v1103, 2147483647
    %v1105 = vand.u32 %v1104, 65535
    %v1106 = vshra.s32 %v1104, 16
    %v1107 = vcvt.s32.f32 %v1105
    %v1108 = vcvt.s32.f32 %v1106
    %1109 = vmin.xlane.f32.xlu0 %v1108
    %v1110 = vpop.xlane.xlu0 %1109
    %vm1111 = vcmp.eq.f32.partialorder %v1108, %v1110
    %v1112 = vsel %vm1111, %v1107, inf
    %1113 = vmin.xlane.f32.xlu0 %v1112
    %v1114 = vpop.xlane.xlu0 %1113
    %v1115 = vcvt.f32.s32 %v1114
    %v1116 = vcvt.f32.s32 %v1110
    %v1117 = vshll.u32 %v1116, 16
    %v1118 = vadd.s32 %v1117, %v1115
    %v1119 = vadd.f32 %v1101, %v942
    %v1120 = vld [vmem:[%s8] sm:$0x3f]
    %v1121 = vadd.f32 %v1119, %v1120
    %vm1122 = vcmask 5120
    %v1123 = vsel %vm1122, %v1121, -inf
    %v1124 = vrot.slane %v1123, 4
    %v1125 = vmax.f32 %v1123, %v1124
    %v1126 = vrot.slane %v1125, 2
    %v1127 = vmax.f32 %v1125, %v1126
    %v1128 = vrot.slane %v1127, 1
    %v1129 = vmax.f32 %v1127, %v1128
    %vm1130 = vcmp.eq.f32.partialorder %v1121, %v1129
    %v1131 = vsel %vm1130, %v117, 6
    %v1132 = vsel %vm1122, %v1131, 2147483647
    %v1133 = vrot.slane %v1132, 4
    %vm1134 = vcmp.lt.s32.totalorder %v1132, %v1133
    %v1135 = vsel %vm1134, %v1132, %v1133
    %v1136 = vrot.slane %v1135, 2
    %vm1137 = vcmp.lt.s32.totalorder %v1135, %v1136
    %v1138 = vsel %vm1137, %v1135, %v1136
    %v1139 = vrot.slane %v1138, 1
    %vm1140 = vcmp.lt.s32.totalorder %v1138, %v1139
    %v1141 = vsel %vm1140, %v1138, %v1139
    %vm1142 = vcmask 0
    %1143 = vst.msk [vmem:[#allocation2] sm:$0x1] %vm1142, %v1129
    %vm1144 = vcmp.eq.s32.totalorder %v112, 7
    %1145 = vset.pattern.permute.xlu0 0
    %1146 = vperm.xlu0 %1145, %v1141
    %v1147 = vpop.permute.xlu0 %1146
    %v1148 = vsel %vm1144, %v1147, 0
    %vm1149 = vcmp.eq.s32.totalorder %v117, %v1141
    %v1150 = vsel %vm1149, %v1118, 0
    %v1151 = vsel %vm1122, %v1150, 0
    %v1152 = vrot.slane %v1151, 4
    %v1153 = vadd.s32 %v1151, %v1152
    %v1154 = vrot.slane %v1153, 2
    %v1155 = vadd.s32 %v1153, %v1154
    %v1156 = vrot.slane %v1155, 1
    %v1157 = vadd.s32 %v1155, %v1156
    %vm1158 = vcmp.eq.s32.totalorder %v112, 6
    %1159 = vset.pattern.permute.xlu0 0
    %1160 = vperm.xlu0 %1159, %v1157
    %v1161 = vpop.permute.xlu0 %1160
    %v1162 = vsel %vm1158, %v1161, %v1148
    %vm1163 = vcmp.eq.s32.totalorder %v112, %v1161
    %v1164 = vsel %vm1163, %v1092, 0
    %vm1165 = vcmask 48128
    %v1166 = vsel %vm1165, %v1164, 0
    %v1167 = vand.u32 %v1166, 65535
    %v1168 = vshrl.u32 %v1166, 16
    %v1169 = vcvt.s32.f32 %v1167
    %v1170 = vcvt.s32.f32 %v1168
    %1171 = vadd.xlane.f32.xlu0 %v1169
    %v1172 = vpop.xlane.xlu0 %1171
    %1173 = vadd.xlane.f32.xlu0 %v1170
    %v1174 = vpop.xlane.xlu0 %1173
    %v1175 = vcvt.f32.s32 %v1172
    %v1176 = vcvt.f32.s32 %v1174
    %v1177 = vshll.u32 %v1176, 16
    %v1178 = vadd.s32 %v1177, %v1175
    %vm1179 = vcmp.eq.s32.totalorder %v112, 5
    %v1180 = vsel %vm1179, %v1178, %v1162
    %vm1181 = vcmp.eq.s32.totalorder %v117, %v1178
    %v1182 = vsel %vm1181, %v1071, 0
    %vm1183 = vcmask 1045504
    %v1184 = vsel %vm1183, %v1182, 0
    %v1185 = vrot.slane %v1184, 4
    %v1186 = vadd.s32 %v1184, %v1185
    %v1187 = vrot.slane %v1186, 2
    %v1188 = vadd.s32 %v1186, %v1187
    %v1189 = vrot.slane %v1188, 1
    %v1190 = vadd.s32 %v1188, %v1189
    %vm1191 = vcmp.eq.s32.totalorder %v112, 4
    %v1192 = vsel %vm1191, %v1190, %v1180
    %vm1193 = vcmp.eq.s32.totalorder %v112, %v1190
    %v1194 = vsel %vm1193, %v1045, 0
    %v1195 = vsel %vm1165, %v1194, 0
    %v1196 = vand.u32 %v1195, 65535
    %v1197 = vshrl.u32 %v1195, 16
    %v1198 = vcvt.s32.f32 %v1196
    %v1199 = vcvt.s32.f32 %v1197
    %1200 = vadd.xlane.f32.xlu0 %v1198
    %v1201 = vpop.xlane.xlu0 %1200
    %1202 = vadd.xlane.f32.xlu0 %v1199
    %v1203 = vpop.xlane.xlu0 %1202
    %v1204 = vcvt.f32.s32 %v1201
    %v1205 = vcvt.f32.s32 %v1203
    %v1206 = vshll.u32 %v1205, 16
    %v1207 = vadd.s32 %v1206, %v1204
    %vm1208 = vcmp.eq.s32.totalorder %v112, 3
    %v1209 = vsel %vm1208, %v1207, %v1192
    %vm1210 = vcmp.eq.s32.totalorder %v117, %v1207
    %v1211 = vsel %vm1210, %v1024, 0
    %v1212 = vsel %vm1183, %v1211, 0
    %v1213 = vrot.slane %v1212, 4
    %v1214 = vadd.s32 %v1212, %v1213
    %v1215 = vrot.slane %v1214, 2
    %v1216 = vadd.s32 %v1214, %v1215
    %v1217 = vrot.slane %v1216, 1
    %v1218 = vadd.s32 %v1216, %v1217
    %vm1219 = vcmp.eq.s32.totalorder %v112, 2
    %v1220 = vsel %vm1219, %v1218, %v1209
    %vm1221 = vcmp.eq.s32.totalorder %v112, %v1218
    %v1222 = vsel %vm1221, %v998, 0
    %v1223 = vsel %vm1165, %v1222, 0
    %v1224 = vand.u32 %v1223, 65535
    %v1225 = vshrl.u32 %v1223, 16
    %v1226 = vcvt.s32.f32 %v1224
    %v1227 = vcvt.s32.f32 %v1225
    %1228 = vadd.xlane.f32.xlu0 %v1226
    %v1229 = vpop.xlane.xlu0 %1228
    %1230 = vadd.xlane.f32.xlu0 %v1227
    %v1231 = vpop.xlane.xlu0 %1230
    %v1232 = vcvt.f32.s32 %v1229
    %v1233 = vcvt.f32.s32 %v1231
    %v1234 = vshll.u32 %v1233, 16
    %v1235 = vadd.s32 %v1234, %v1232
    %vm1236 = vcmp.eq.s32.totalorder %v112, 1
    %v1237 = vsel %vm1236, %v1235, %v1220
    %vm1238 = vcmp.eq.s32.totalorder %v117, %v1235
    %v1239 = vsel %vm1238, %v977, 0
    %v1240 = vsel %vm1183, %v1239, 0
    %v1241 = vrot.slane %v1240, 4
    %v1242 = vadd.s32 %v1240, %v1241
    %v1243 = vrot.slane %v1242, 2
    %v1244 = vadd.s32 %v1242, %v1243
    %v1245 = vrot.slane %v1244, 1
    %v1246 = vadd.s32 %v1244, %v1245
    %vm1247 = vcmp.eq.s32.totalorder %v112, 0
    %v1248 = vsel %vm1247, %v1246, %v1237
    %vm1249 = vcmask 57344
    %1250 = vst.msk [vmem:[#allocation4] sm:$0x1] %vm1249, %v1248
    // Predicated region
    $region46: #{bilstm_crf_forward.1} parent=1 // pred_check
      _
    $region47: #{bilstm_crf_forward.1} parent=1 // pred_check_branch
      %1252 = sbr.rel (0) target = $region49
    $region48: #{bilstm_crf_forward.1} parent=1 // pred_region
      %s1254 = ssub.s32 16, 16
      %1255 = vsyncadd [#allocation3], %s1254
      %s1257 = sshll.u32 [#allocation2], 4
      %s1258 = int_to_ptr.vmem [resolvable:$true] %s1257
      %1260 = dma.vmem_to_hbm [thread:$0]  %s1258, 16, %s11, [#allocation3]
    $region49: #{bilstm_crf_forward.1} parent=1 // pred_fallthru
      _
    // Predicated region
    $region50: #{bilstm_crf_forward.1} parent=1 // pred_check
      _
    $region51: #{bilstm_crf_forward.1} parent=1 // pred_check_branch
      %1262 = sbr.rel (0) target = $region53
    $region52: #{bilstm_crf_forward.1} parent=1 // pred_region
      %s1264 = ssub.s32 16, 16
      %1265 = vsyncadd [#allocation5], %s1264
      %s1267 = sshll.u32 [#allocation4], 4
      %s1268 = int_to_ptr.vmem [resolvable:$true] %s1267
      %1270 = dma.vmem_to_hbm [thread:$0]  %s1268, 16, %s12, [#allocation5]
    $region53: #{bilstm_crf_forward.1} parent=1 // pred_fallthru
      _
    // Predicated region
    $region54: #{bilstm_crf_forward.1} parent=1 // pred_check
      _
    $region55: #{bilstm_crf_forward.1} parent=1 // pred_check_branch
      %1272 = sbr.rel (0) target = $region57
    $region56: #{bilstm_crf_forward.1} parent=1 // pred_region
      %1273 = dma.done [#allocation3], 16
    $region57: #{bilstm_crf_forward.1} parent=1 // pred_fallthru
      _
    // Predicated region
    $region58: #{bilstm_crf_forward.1} parent=1 // pred_check
      _
    $region59: #{bilstm_crf_forward.1} parent=1 // pred_check_branch
      %1275 = sbr.rel (0) target = $region61
    $region60: #{bilstm_crf_forward.1} parent=1 // pred_region
      %1276 = dma.done [#allocation5], 16
    $region61: #{bilstm_crf_forward.1} parent=1 // pred_fallthru
      _
    %1277 = vsyncpa [#allocation3], 1
    %1278 = vsyncpa [#allocation5], 1

</llo_original>
